<compile_context>
chip_gen: v6e
topology: v6e:2x2x1
jax: 0.10.0
libtpu: 0.0.40
codegen_flags: <defaults>
</compile_context>

<pallas_src>
import functools
import math

import jax
import jax.numpy as jnp
from jax import lax
from jax.experimental import pallas as pl
from jax.experimental.pallas import tpu as pltpu

LEAK = 0.2
EPS = 1e-8


def style_block_kernel(s_ref, sig_ref, x_ref, mask_ref, w_ref, bias_ref,
                       scale_noise_ref, noise_ref, o_ref, *, H, W, Cin, pad):
    HW = H * W

    # --- modulation folded onto the input (weight stays batch-invariant) -----
    # x_ref[0]: (Cin, HWP) in compute dtype; s_ref[0]: (Cin, 1) f32.
    xm = x_ref[0].astype(jnp.float32) * s_ref[0]               # (Cin, HWP) f32
    masks = mask_ref[...]                                      # (9, HW) f32

    # --- in-kernel im2col: 9 shifted static lane slices, 9 accumulating dots -
    acc = None
    t = 0
    for dy in (-1, 0, 1):
        for dx in (-1, 0, 1):
            start = pad + dy * W + dx                          # static python int
            xt = xm[:, start:start + HW]                       # (Cin, HW)
            if not (dy == 0 and dx == 0):
                xt = xt * masks[t:t + 1, :]                    # zero invalid taps
            wt = w_ref[t]                                      # (Cout, Cin), compute dtype
            part = jnp.dot(wt, xt.astype(wt.dtype),
                           preferred_element_type=jnp.float32)  # (Cout, HW) f32
            acc = part if acc is None else acc + part
            t += 1

    # --- demodulation folded onto the output rows -----------------------------
    out = acc * sig_ref[0]                                     # (Cout, 1) broadcast

    # --- noise (lane-dense, broadcast over Cout), bias, LeakyReLU(0.2) --------
    out = out + scale_noise_ref[0] * noise_ref[0]              # (1, HW)
    out = out + bias_ref[...]                                  # (Cout, 1)
    o_ref[0] = jnp.where(out >= 0.0, out, LEAK * out).astype(o_ref.dtype)


def style_block_forward(x_nchw, w_lat, noise_nchw, params,
                        *, compute_dtype=jnp.bfloat16):
    B, Cin, H, W = x_nchw.shape
    Cout = params["conv_w_raw"].shape[0]
    HW = H * W
    pad = W + 1                                     # halo for the 9 lane shifts
    HWP = ((HW + 2 * pad + 127) // 128) * 128       # lane-aligned padded width

    # Equalized-lr scaling (trace-time; same math as EqualizedWeight.forward)
    style_w = params["style_w_raw"] * params["c_lin"]      # (Cin, W_DIM)
    conv_w = params["conv_w_raw"] * params["c_conv"]       # (Cout, Cin, 3, 3)

    # ---- to_style + demod factor: two tiny XLA GEMMs for the whole batch ----
    s = w_lat @ style_w.T + params["style_bias"]           # (B, Cin)
    w_sq = jnp.sum(conv_w * conv_w, axis=(2, 3))           # (Cout, Cin)
    sigma_inv = lax.rsqrt((s * s) @ w_sq.T + EPS)          # (B, Cout)
    s3 = s.reshape(B, Cin, 1).astype(jnp.float32)
    sig3 = sigma_inv.reshape(B, Cout, 1).astype(jnp.float32)

    # ---- x streamed once: flat lane-dense HW, zero-padded by (W+1) each side
    x_flat = x_nchw.reshape(B, Cin, HW).astype(compute_dtype)
    x_padf = jnp.pad(x_flat, ((0, 0), (0, 0), (pad, HWP - HW - pad)))

    # ---- per-tap validity masks (constant across batch / grid steps) --------
    hh, ww = jnp.meshgrid(jnp.arange(H), jnp.arange(W), indexing="ij")
    mrows = []
    for dy in (-1, 0, 1):
        for dx in (-1, 0, 1):
            valid = ((hh + dy >= 0) & (hh + dy < H) &
                     (ww + dx >= 0) & (ww + dx < W))
            mrows.append(valid.reshape(HW))
    mask = jnp.stack(mrows).astype(jnp.float32)             # (9, HW)

    # ---- batch-invariant conv weight, per-tap layout: [ky*3+kx, o, i] -------
    conv_w_taps = jnp.transpose(conv_w, (2, 3, 0, 1)).reshape(9, Cout, Cin)
    conv_w_taps = conv_w_taps.astype(compute_dtype)
    bias2 = params["bias"].reshape(Cout, 1).astype(jnp.float32)
    scale_noise = params["scale_noise"].reshape(1).astype(jnp.float32)  # -> SMEM
    noise_flat = noise_nchw.reshape(B, 1, HW).astype(jnp.float32)

    kernel = functools.partial(style_block_kernel, H=H, W=W, Cin=Cin, pad=pad)

    out_flat = pl.pallas_call(
        kernel,
        out_shape=jax.ShapeDtypeStruct((B, Cout, HW), jnp.float32),
        grid_spec=pltpu.PrefetchScalarGridSpec(
            num_scalar_prefetch=0,
            grid=(B,),
            in_specs=[
                pl.BlockSpec((1, Cin, 1), lambda b: (b, 0, 0)),      # style s
                pl.BlockSpec((1, Cout, 1), lambda b: (b, 0, 0)),     # sigma_inv
                pl.BlockSpec((1, Cin, HWP), lambda b: (b, 0, 0)),    # padded x
                pl.BlockSpec((9, HW), lambda b: (0, 0)),             # tap masks
                pl.BlockSpec((9, Cout, Cin), lambda b: (0, 0, 0)),   # conv weight
                pl.BlockSpec((Cout, 1), lambda b: (0, 0)),           # bias
                pl.BlockSpec(memory_space=pltpu.MemorySpace.SMEM),   # scale_noise
                pl.BlockSpec((1, 1, HW), lambda b: (b, 0, 0)),       # noise
            ],
            out_specs=pl.BlockSpec((1, Cout, HW), lambda b: (b, 0, 0)),
        ),
        compiler_params=pltpu.CompilerParams(dimension_semantics=("parallel",)),
    )(s3, sig3, x_padf, mask, conv_w_taps, bias2, scale_noise, noise_flat)

    return out_flat.reshape(B, Cout, H, W)                   # free reshape to NCHW


def style_block_reference(x_nchw, w_lat, noise_nchw, params):
    """Pure-JAX reference matching the PyTorch StyleBlock.forward."""
    B = x_nchw.shape[0]
    style_w = params["style_w_raw"] * params["c_lin"]
    s = w_lat @ style_w.T + params["style_bias"]                         # (B, Cin)
    cw = params["conv_w_raw"] * params["c_conv"]                         # (Cout,Cin,3,3)
    weights = cw[None] * s[:, None, :, None, None]
    sigma_inv = lax.rsqrt(jnp.sum(weights ** 2, axis=(2, 3, 4), keepdims=True) + EPS)
    weights = weights * sigma_inv
    outs = []
    for b in range(B):
        outs.append(lax.conv_general_dilated(
            x_nchw[b:b + 1], weights[b], (1, 1), ((1, 1), (1, 1)),
            dimension_numbers=("NCHW", "OIHW", "NCHW")))
    out = jnp.concatenate(outs, axis=0)
    out = out + params["scale_noise"][None, :, None, None] * noise_nchw
    out = out + params["bias"][None, :, None, None]
    return jnp.where(out >= 0.0, out, LEAK * out)


if __name__ == "__main__":
    W_DIM = 256
    B, Cin, Cout, H, W = 2, 4, 8, 16, 16

    key = jax.random.PRNGKey(0)
    k1, k2, k3, k4, k5, k6, k7 = jax.random.split(key, 7)

    # Parameter shapes follow StyleBlock.__init__ (deterministic synthetic init;
    # scale_noise / bias drawn non-zero instead of zeros to exercise those paths).
    params = {
        "style_w_raw": jax.random.normal(k1, (Cin, W_DIM), jnp.float32),
        "style_bias": jnp.ones((Cin,), jnp.float32) * 1.0,
        "conv_w_raw": jax.random.normal(k2, (Cout, Cin, 3, 3), jnp.float32),
        "scale_noise": jax.random.normal(k3, (1,), jnp.float32) * 0.1,
        "bias": jax.random.normal(k4, (Cout,), jnp.float32) * 0.1,
        "c_lin": 1.0 / math.sqrt(W_DIM),
        "c_conv": 1.0 / math.sqrt(Cin * 3 * 3),
    }

    x = jax.random.normal(k5, (B, Cin, H, W), jnp.float32)       # NCHW, like PyTorch
    w_lat = jax.random.normal(k6, (B, W_DIM), jnp.float32)
    noise = jax.random.normal(k7, (B, 1, H, W), jnp.float32)

    ref = style_block_reference(x, w_lat, noise, params)

    # f32 MXU path: tight numerical check against the PyTorch-equivalent reference.
    fwd_f32 = jax.jit(functools.partial(style_block_forward, compute_dtype=jnp.float32))
    out32 = jax.block_until_ready(fwd_f32(x, w_lat, noise, params))
    assert out32.shape == (B, Cout, H, W)
    assert jnp.allclose(out32, ref, rtol=1e-4, atol=1e-4), \
        f"f32 max abs err {float(jnp.max(jnp.abs(out32 - ref)))}"

    # bf16 MXU path (perf default): operands bf16, accumulation/epilogue f32.
    fwd_bf16 = jax.jit(functools.partial(style_block_forward, compute_dtype=jnp.bfloat16))
    out16 = jax.block_until_ready(fwd_bf16(x, w_lat, noise, params))
    err16 = float(jnp.max(jnp.abs(out16 - ref)))
    assert err16 < 0.25, f"bf16 max abs err {err16}"

    print("KERNEL_OK")
</pallas_src>

<mosaic_0001>
module attributes {stable_mosaic.version = 11 : i64} {
  func.func @style_block_kernel(%arg0: i32, %arg1: memref<1x4x1xf32, #tpu.memory_space<vmem>>, %arg2: memref<1x8x1xf32, #tpu.memory_space<vmem>>, %arg3: memref<1x4x384xf32, #tpu.memory_space<vmem>>, %arg4: memref<9x256xf32, #tpu.memory_space<vmem>>, %arg5: memref<9x8x4xf32, #tpu.memory_space<vmem>>, %arg6: memref<8x1xf32, #tpu.memory_space<vmem>>, %arg7: memref<1xf32, #tpu.memory_space<smem>>, %arg8: memref<1x1x256xf32, #tpu.memory_space<vmem>>, %arg9: memref<1x8x256xf32, #tpu.memory_space<vmem>>) attributes {dimension_semantics = [#tpu.dimension_semantics<parallel>], iteration_bounds = array<i64: 2>, scalar_prefetch = 0 : i64, scratch_operands = 0 : i64, tpu.core_type = #tpu.core_type<tc>, window_params = [{transform_indices = @transform_0, window_bounds = array<i64: 1, 4, 1>}, {transform_indices = @transform_1, window_bounds = array<i64: 1, 8, 1>}, {transform_indices = @transform_2, window_bounds = array<i64: 1, 4, 384>}, {pipeline_mode = #tpu.pipeline_mode<synchronous>, transform_indices = @transform_3, window_bounds = array<i64: 9, 256>}, {pipeline_mode = #tpu.pipeline_mode<synchronous>, transform_indices = @transform_4, window_bounds = array<i64: 9, 8, 4>}, {pipeline_mode = #tpu.pipeline_mode<synchronous>, transform_indices = @transform_5, window_bounds = array<i64: 8, 1>}, {transform_indices = @transform_6, window_bounds = array<i64: 1>}, {transform_indices = @transform_7, window_bounds = array<i64: 1, 1, 256>}, {transform_indices = @transform_8, window_bounds = array<i64: 1, 8, 256>}]} {
    %c0 = arith.constant 0 : index
    %c0_0 = arith.constant 0 : index
    %c0_1 = arith.constant 0 : index
    %0 = vector.load %arg3[%c0, %c0_0, %c0_1] : memref<1x4x384xf32, #tpu.memory_space<vmem>>, vector<1x4x384xf32>
    %1 = vector.shape_cast %0 : vector<1x4x384xf32> to vector<4x384xf32>
    %c0_2 = arith.constant 0 : index
    %c0_3 = arith.constant 0 : index
    %c0_4 = arith.constant 0 : index
    %2 = vector.load %arg1[%c0_2, %c0_3, %c0_4] : memref<1x4x1xf32, #tpu.memory_space<vmem>>, vector<1x4x1xf32>
    %3 = vector.shape_cast %2 : vector<1x4x1xf32> to vector<4x1xf32>
    %4 = vector.broadcast %3 : vector<4x1xf32> to vector<4x384xf32>
    %5 = arith.mulf %1, %4 : vector<4x384xf32>
    %c0_5 = arith.constant 0 : index
    %c0_6 = arith.constant 0 : index
    %6 = vector.load %arg4[%c0_5, %c0_6] : memref<9x256xf32, #tpu.memory_space<vmem>>, vector<9x256xf32>
    %7 = vector.extract_strided_slice %5 {offsets = [0, 0], sizes = [4, 256], strides = [1, 1]} : vector<4x384xf32> to vector<4x256xf32>
    %8 = vector.extract_strided_slice %6 {offsets = [0, 0], sizes = [1, 256], strides = [1, 1]} : vector<9x256xf32> to vector<1x256xf32>
    %9 = vector.broadcast %8 : vector<1x256xf32> to vector<4x256xf32>
    %10 = arith.mulf %7, %9 : vector<4x256xf32>
    %c0_7 = arith.constant 0 : index
    %c0_8 = arith.constant 0 : index
    %c0_9 = arith.constant 0 : index
    %11 = vector.load %arg5[%c0_7, %c0_8, %c0_9] : memref<9x8x4xf32, #tpu.memory_space<vmem>>, vector<1x8x4xf32>
    %12 = vector.shape_cast %11 : vector<1x8x4xf32> to vector<8x4xf32>
    %cst = arith.constant dense<0.000000e+00> : vector<8x256xf32>
    %13 = tpu.matmul %12, %10, %cst {dimension_numbers = #tpu.dot_dimension_numbers<[1], [0], [0], [1], [0, 0, 1, 1], [], []>} : vector<8x4xf32>, vector<4x256xf32>, vector<8x256xf32> -> vector<8x256xf32>
    %14 = vector.extract_strided_slice %5 {offsets = [0, 1], sizes = [4, 256], strides = [1, 1]} : vector<4x384xf32> to vector<4x256xf32>
    %15 = vector.extract_strided_slice %6 {offsets = [1, 0], sizes = [1, 256], strides = [1, 1]} : vector<9x256xf32> to vector<1x256xf32>
    %16 = vector.broadcast %15 : vector<1x256xf32> to vector<4x256xf32>
    %17 = arith.mulf %14, %16 : vector<4x256xf32>
    %c1 = arith.constant 1 : index
    %c0_10 = arith.constant 0 : index
    %c0_11 = arith.constant 0 : index
    %18 = vector.load %arg5[%c1, %c0_10, %c0_11] : memref<9x8x4xf32, #tpu.memory_space<vmem>>, vector<1x8x4xf32>
    %19 = vector.shape_cast %18 : vector<1x8x4xf32> to vector<8x4xf32>
    %cst_12 = arith.constant dense<0.000000e+00> : vector<8x256xf32>
    %20 = tpu.matmul %19, %17, %cst_12 {dimension_numbers = #tpu.dot_dimension_numbers<[1], [0], [0], [1], [0, 0, 1, 1], [], []>} : vector<8x4xf32>, vector<4x256xf32>, vector<8x256xf32> -> vector<8x256xf32>
    %21 = arith.addf %13, %20 : vector<8x256xf32>
    %22 = vector.extract_strided_slice %5 {offsets = [0, 2], sizes = [4, 256], strides = [1, 1]} : vector<4x384xf32> to vector<4x256xf32>
    %23 = vector.extract_strided_slice %6 {offsets = [2, 0], sizes = [1, 256], strides = [1, 1]} : vector<9x256xf32> to vector<1x256xf32>
    %24 = vector.broadcast %23 : vector<1x256xf32> to vector<4x256xf32>
    %25 = arith.mulf %22, %24 : vector<4x256xf32>
    %c2 = arith.constant 2 : index
    %c0_13 = arith.constant 0 : index
    %c0_14 = arith.constant 0 : index
    %26 = vector.load %arg5[%c2, %c0_13, %c0_14] : memref<9x8x4xf32, #tpu.memory_space<vmem>>, vector<1x8x4xf32>
    %27 = vector.shape_cast %26 : vector<1x8x4xf32> to vector<8x4xf32>
    %cst_15 = arith.constant dense<0.000000e+00> : vector<8x256xf32>
    %28 = tpu.matmul %27, %25, %cst_15 {dimension_numbers = #tpu.dot_dimension_numbers<[1], [0], [0], [1], [0, 0, 1, 1], [], []>} : vector<8x4xf32>, vector<4x256xf32>, vector<8x256xf32> -> vector<8x256xf32>
    %29 = arith.addf %21, %28 : vector<8x256xf32>
    %30 = vector.extract_strided_slice %5 {offsets = [0, 16], sizes = [4, 256], strides = [1, 1]} : vector<4x384xf32> to vector<4x256xf32>
    %31 = vector.extract_strided_slice %6 {offsets = [3, 0], sizes = [1, 256], strides = [1, 1]} : vector<9x256xf32> to vector<1x256xf32>
    %32 = vector.broadcast %31 : vector<1x256xf32> to vector<4x256xf32>
    %33 = arith.mulf %30, %32 : vector<4x256xf32>
    %c3 = arith.constant 3 : index
    %c0_16 = arith.constant 0 : index
    %c0_17 = arith.constant 0 : index
    %34 = vector.load %arg5[%c3, %c0_16, %c0_17] : memref<9x8x4xf32, #tpu.memory_space<vmem>>, vector<1x8x4xf32>
    %35 = vector.shape_cast %34 : vector<1x8x4xf32> to vector<8x4xf32>
    %cst_18 = arith.constant dense<0.000000e+00> : vector<8x256xf32>
    %36 = tpu.matmul %35, %33, %cst_18 {dimension_numbers = #tpu.dot_dimension_numbers<[1], [0], [0], [1], [0, 0, 1, 1], [], []>} : vector<8x4xf32>, vector<4x256xf32>, vector<8x256xf32> -> vector<8x256xf32>
    %37 = arith.addf %29, %36 : vector<8x256xf32>
    %38 = vector.extract_strided_slice %5 {offsets = [0, 17], sizes = [4, 256], strides = [1, 1]} : vector<4x384xf32> to vector<4x256xf32>
    %c4 = arith.constant 4 : index
    %c0_19 = arith.constant 0 : index
    %c0_20 = arith.constant 0 : index
    %39 = vector.load %arg5[%c4, %c0_19, %c0_20] : memref<9x8x4xf32, #tpu.memory_space<vmem>>, vector<1x8x4xf32>
    %40 = vector.shape_cast %39 : vector<1x8x4xf32> to vector<8x4xf32>
    %cst_21 = arith.constant dense<0.000000e+00> : vector<8x256xf32>
    %41 = tpu.matmul %40, %38, %cst_21 {dimension_numbers = #tpu.dot_dimension_numbers<[1], [0], [0], [1], [0, 0, 1, 1], [], []>} : vector<8x4xf32>, vector<4x256xf32>, vector<8x256xf32> -> vector<8x256xf32>
    %42 = arith.addf %37, %41 : vector<8x256xf32>
    %43 = vector.extract_strided_slice %5 {offsets = [0, 18], sizes = [4, 256], strides = [1, 1]} : vector<4x384xf32> to vector<4x256xf32>
    %44 = vector.extract_strided_slice %6 {offsets = [5, 0], sizes = [1, 256], strides = [1, 1]} : vector<9x256xf32> to vector<1x256xf32>
    %45 = vector.broadcast %44 : vector<1x256xf32> to vector<4x256xf32>
    %46 = arith.mulf %43, %45 : vector<4x256xf32>
    %c5 = arith.constant 5 : index
    %c0_22 = arith.constant 0 : index
    %c0_23 = arith.constant 0 : index
    %47 = vector.load %arg5[%c5, %c0_22, %c0_23] : memref<9x8x4xf32, #tpu.memory_space<vmem>>, vector<1x8x4xf32>
    %48 = vector.shape_cast %47 : vector<1x8x4xf32> to vector<8x4xf32>
    %cst_24 = arith.constant dense<0.000000e+00> : vector<8x256xf32>
    %49 = tpu.matmul %48, %46, %cst_24 {dimension_numbers = #tpu.dot_dimension_numbers<[1], [0], [0], [1], [0, 0, 1, 1], [], []>} : vector<8x4xf32>, vector<4x256xf32>, vector<8x256xf32> -> vector<8x256xf32>
    %50 = arith.addf %42, %49 : vector<8x256xf32>
    %51 = vector.extract_strided_slice %5 {offsets = [0, 32], sizes = [4, 256], strides = [1, 1]} : vector<4x384xf32> to vector<4x256xf32>
    %52 = vector.extract_strided_slice %6 {offsets = [6, 0], sizes = [1, 256], strides = [1, 1]} : vector<9x256xf32> to vector<1x256xf32>
    %53 = vector.broadcast %52 : vector<1x256xf32> to vector<4x256xf32>
    %54 = arith.mulf %51, %53 : vector<4x256xf32>
    %c6 = arith.constant 6 : index
    %c0_25 = arith.constant 0 : index
    %c0_26 = arith.constant 0 : index
    %55 = vector.load %arg5[%c6, %c0_25, %c0_26] : memref<9x8x4xf32, #tpu.memory_space<vmem>>, vector<1x8x4xf32>
    %56 = vector.shape_cast %55 : vector<1x8x4xf32> to vector<8x4xf32>
    %cst_27 = arith.constant dense<0.000000e+00> : vector<8x256xf32>
    %57 = tpu.matmul %56, %54, %cst_27 {dimension_numbers = #tpu.dot_dimension_numbers<[1], [0], [0], [1], [0, 0, 1, 1], [], []>} : vector<8x4xf32>, vector<4x256xf32>, vector<8x256xf32> -> vector<8x256xf32>
    %58 = arith.addf %50, %57 : vector<8x256xf32>
    %59 = vector.extract_strided_slice %5 {offsets = [0, 33], sizes = [4, 256], strides = [1, 1]} : vector<4x384xf32> to vector<4x256xf32>
    %60 = vector.extract_strided_slice %6 {offsets = [7, 0], sizes = [1, 256], strides = [1, 1]} : vector<9x256xf32> to vector<1x256xf32>
    %61 = vector.broadcast %60 : vector<1x256xf32> to vector<4x256xf32>
    %62 = arith.mulf %59, %61 : vector<4x256xf32>
    %c7 = arith.constant 7 : index
    %c0_28 = arith.constant 0 : index
    %c0_29 = arith.constant 0 : index
    %63 = vector.load %arg5[%c7, %c0_28, %c0_29] : memref<9x8x4xf32, #tpu.memory_space<vmem>>, vector<1x8x4xf32>
    %64 = vector.shape_cast %63 : vector<1x8x4xf32> to vector<8x4xf32>
    %cst_30 = arith.constant dense<0.000000e+00> : vector<8x256xf32>
    %65 = tpu.matmul %64, %62, %cst_30 {dimension_numbers = #tpu.dot_dimension_numbers<[1], [0], [0], [1], [0, 0, 1, 1], [], []>} : vector<8x4xf32>, vector<4x256xf32>, vector<8x256xf32> -> vector<8x256xf32>
    %66 = arith.addf %58, %65 : vector<8x256xf32>
    %67 = vector.extract_strided_slice %5 {offsets = [0, 34], sizes = [4, 256], strides = [1, 1]} : vector<4x384xf32> to vector<4x256xf32>
    %68 = vector.extract_strided_slice %6 {offsets = [8, 0], sizes = [1, 256], strides = [1, 1]} : vector<9x256xf32> to vector<1x256xf32>
    %69 = vector.broadcast %68 : vector<1x256xf32> to vector<4x256xf32>
    %70 = arith.mulf %67, %69 : vector<4x256xf32>
    %c8 = arith.constant 8 : index
    %c0_31 = arith.constant 0 : index
    %c0_32 = arith.constant 0 : index
    %71 = vector.load %arg5[%c8, %c0_31, %c0_32] : memref<9x8x4xf32, #tpu.memory_space<vmem>>, vector<1x8x4xf32>
    %72 = vector.shape_cast %71 : vector<1x8x4xf32> to vector<8x4xf32>
    %cst_33 = arith.constant dense<0.000000e+00> : vector<8x256xf32>
    %73 = tpu.matmul %72, %70, %cst_33 {dimension_numbers = #tpu.dot_dimension_numbers<[1], [0], [0], [1], [0, 0, 1, 1], [], []>} : vector<8x4xf32>, vector<4x256xf32>, vector<8x256xf32> -> vector<8x256xf32>
    %74 = arith.addf %66, %73 : vector<8x256xf32>
    %c0_34 = arith.constant 0 : index
    %c0_35 = arith.constant 0 : index
    %c0_36 = arith.constant 0 : index
    %75 = vector.load %arg2[%c0_34, %c0_35, %c0_36] : memref<1x8x1xf32, #tpu.memory_space<vmem>>, vector<1x8x1xf32>
    %76 = vector.shape_cast %75 : vector<1x8x1xf32> to vector<8x1xf32>
    %77 = vector.broadcast %76 : vector<8x1xf32> to vector<8x256xf32>
    %78 = arith.mulf %74, %77 : vector<8x256xf32>
    %c0_37 = arith.constant 0 : index
    %79 = memref.load %arg7[%c0_37] : memref<1xf32, #tpu.memory_space<smem>>
    %c0_38 = arith.constant 0 : index
    %c0_39 = arith.constant 0 : index
    %c0_40 = arith.constant 0 : index
    %80 = vector.load %arg8[%c0_38, %c0_39, %c0_40] : memref<1x1x256xf32, #tpu.memory_space<vmem>>, vector<1x1x256xf32>
    %81 = vector.shape_cast %80 : vector<1x1x256xf32> to vector<1x256xf32>
    %82 = vector.broadcast %79 : f32 to vector<1x256xf32>
    %83 = arith.mulf %82, %81 : vector<1x256xf32>
    %84 = vector.broadcast %83 : vector<1x256xf32> to vector<8x256xf32>
    %85 = arith.addf %78, %84 : vector<8x256xf32>
    %c0_41 = arith.constant 0 : index
    %c0_42 = arith.constant 0 : index
    %86 = vector.load %arg6[%c0_41, %c0_42] : memref<8x1xf32, #tpu.memory_space<vmem>>, vector<8x1xf32>
    %87 = vector.broadcast %86 : vector<8x1xf32> to vector<8x256xf32>
    %88 = arith.addf %85, %87 : vector<8x256xf32>
    %cst_43 = arith.constant 0.000000e+00 : f32
    %89 = vector.broadcast %cst_43 : f32 to vector<8x256xf32>
    %90 = arith.cmpf oge, %88, %89 : vector<8x256xf32>
    %cst_44 = arith.constant 2.000000e-01 : f32
    %91 = vector.broadcast %cst_44 : f32 to vector<8x256xf32>
    %92 = arith.mulf %91, %88 : vector<8x256xf32>
    %93 = arith.select %90, %88, %92 : vector<8x256xi1>, vector<8x256xf32>
    %c0_45 = arith.constant 0 : index
    %c0_46 = arith.constant 0 : index
    %c0_47 = arith.constant 0 : index
    %94 = vector.load %arg9[%c0_45, %c0_46, %c0_47] : memref<1x8x256xf32, #tpu.memory_space<vmem>>, vector<1x8x256xf32>
    %95 = vector.shape_cast %94 : vector<1x8x256xf32> to vector<8x256xf32>
    %96 = vector.shape_cast %93 : vector<8x256xf32> to vector<1x8x256xf32>
    tpu.vector_store %arg9[%c0_45, %c0_46, %c0_47], %96 {strides = array<i32>} : memref<1x8x256xf32, #tpu.memory_space<vmem>>, vector<1x8x256xf32>,
    return
  }
  func.func @transform_0(%arg0: i32) -> (i32, i32, i32) {
    %c0_i32 = arith.constant 0 : i32
    %c0_i32_0 = arith.constant 0 : i32
    %c0_i32_1 = arith.constant 0 : i32
    return %arg0, %c0_i32, %c0_i32_0 : i32, i32, i32
  }
  func.func @transform_1(%arg0: i32) -> (i32, i32, i32) {
    %c0_i32 = arith.constant 0 : i32
    %c0_i32_0 = arith.constant 0 : i32
    %c0_i32_1 = arith.constant 0 : i32
    return %arg0, %c0_i32, %c0_i32_0 : i32, i32, i32
  }
  func.func @transform_2(%arg0: i32) -> (i32, i32, i32) {
    %c0_i32 = arith.constant 0 : i32
    %c0_i32_0 = arith.constant 0 : i32
    %c0_i32_1 = arith.constant 0 : i32
    return %arg0, %c0_i32, %c0_i32_0 : i32, i32, i32
  }
  func.func @transform_3(%arg0: i32) -> (i32, i32) {
    %c0_i32 = arith.constant 0 : i32
    %c0_i32_0 = arith.constant 0 : i32
    %c0_i32_1 = arith.constant 0 : i32
    return %c0_i32, %c0_i32_0 : i32, i32
  }
  func.func @transform_4(%arg0: i32) -> (i32, i32, i32) {
    %c0_i32 = arith.constant 0 : i32
    %c0_i32_0 = arith.constant 0 : i32
    %c0_i32_1 = arith.constant 0 : i32
    %c0_i32_2 = arith.constant 0 : i32
    return %c0_i32, %c0_i32_0, %c0_i32_1 : i32, i32, i32
  }
  func.func @transform_5(%arg0: i32) -> (i32, i32) {
    %c0_i32 = arith.constant 0 : i32
    %c0_i32_0 = arith.constant 0 : i32
    %c0_i32_1 = arith.constant 0 : i32
    return %c0_i32, %c0_i32_0 : i32, i32
  }
  func.func @transform_6(%arg0: i32) -> i32 {
    %c0_i32 = arith.constant 0 : i32
    %c0_i32_0 = arith.constant 0 : i32
    return %c0_i32 : i32
  }
  func.func @transform_7(%arg0: i32) -> (i32, i32, i32) {
    %c0_i32 = arith.constant 0 : i32
    %c0_i32_0 = arith.constant 0 : i32
    %c0_i32_1 = arith.constant 0 : i32
    return %arg0, %c0_i32, %c0_i32_0 : i32, i32, i32
  }
  func.func @transform_8(%arg0: i32) -> (i32, i32, i32) {
    %c0_i32 = arith.constant 0 : i32
    %c0_i32_0 = arith.constant 0 : i32
    %c0_i32_1 = arith.constant 0 : i32
    return %arg0, %c0_i32, %c0_i32_0 : i32, i32, i32
  }
}

</mosaic_0001>

<llo_original>
// kernel: style_block_forward.1
$region0: #{style_block_forward.1}
  #allocation0 [shape = 'u32[]', space=smem, size = 0x4, offset = 0x4, fixed_abs, tag = 'smem constant byte address 0x4 - core index']
  #allocation1 [shape = 'u32[144,128]{1,0:T(1,128)}', space=vmem, size = 0x12000, scoped, tag = 'internal scratch']
  #allocation2 [shape = 'f32[1]{0:T(128)S(6)}', space=smem, size = 0x200, scoped, tag = 'scoped memory for style_block_forward.1']
  %s0 = inlined_call_operand.vmem [shape: f32[2,4,1], index: 0, kind: input, shape index: {}]
  %s1 = inlined_call_operand.vmem [shape: f32[2,8,1], index: 1, kind: input, shape index: {}]
  %s2 = inlined_call_operand.vmem [shape: f32[2,4,384], index: 2, kind: input, shape index: {}]
  %s3 = inlined_call_operand.vmem [shape: f32[9,256], index: 3, kind: input, shape index: {}]
  %s4 = inlined_call_operand.vmem [shape: f32[9,8,4], index: 4, kind: input, shape index: {}]
  %s5 = inlined_call_operand.vmem [shape: f32[8,1], index: 5, kind: input, shape index: {}]
  %s6 = inlined_call_operand.<no memory space> [shape: f32[1], index: 6, kind: input, shape index: {}]
  %s7 = inlined_call_operand.vmem [shape: f32[2,1,256], index: 7, kind: input, shape index: {}]
  %s8 = inlined_call_operand.vmem [shape: f32[2,8,256], index: 8, kind: output, shape index: {}]
  %s9 = sld [smem:[#allocation0]]
  $region65: #{style_block_forward.1} parent=0
    _
  %s11 = ssub.s32 1, %s9
  %s12 = scalar_select 0, %s11, %s9
  %13 = sst [smem:[#allocation2]] %s6
  loop: start=0, step=1, limit=4
  $region2: #{style_block_forward.1} parent=0 // loop_pre_header
    _
  $region3: #{style_block_forward.1} parent=0 // loop_header
    %s15 = sphi 0, %s19
    %p16 = scmp.ge.s32.totalorder %s15, 4
    %s25 = sphi 0, %s27
    %s28 = sphi 0, %s25
    %s29 = sphi 0, %s28
    %s45 = sphi 0, %s29
    %s51 = sphi 0, %s53
    %s54 = sphi 0, %s51
    %s55 = sphi 0, %s54
    %s71 = sphi 0, %s55
    %s77 = sphi 0, %s79
    %s80 = sphi 0, %s77
    %s81 = sphi 0, %s80
    %s97 = sphi 0, %s81
    %s101 = sphi 0, %s101
    %s103 = sphi 0, %s101
    %s104 = sphi 0, %s103
    %s118 = sphi 0, %s104
    %s122 = sphi 0, %s122
    %s124 = sphi 0, %s122
    %s125 = sphi 0, %s124
    %s139 = sphi 0, %s125
    %s143 = sphi 0, %s143
    %s145 = sphi 0, %s143
    %s146 = sphi 0, %s145
    %s160 = sphi 0, %s146
    %s164 = sphi 0, %s164
    %s166 = sphi 0, %s164
    %s167 = sphi 0, %s166
    %s181 = sphi 0, %s167
    %s187 = sphi 0, %s189
    %s190 = sphi 0, %s187
    %s191 = sphi 0, %s190
    %s207 = sphi 0, %s191
    %s213 = sphi 0, %s215
    %s216 = sphi 0, %s213
    %s217 = sphi 0, %s216
    %s233 = sphi 0, %s217
  $region4: #{style_block_forward.1} parent=0 // loop_header_branch
    %18 = sbr.rel (%p16) target = $region8
  $region5: #{style_block_forward.1} parent=0 // loop_body
    %s20 = ssub.s32 %s15, 1
    %s21 = ssub.s32 %s15, 2
    %s22 = sadd.s32 %s15, 1
    %s23 = ssub.s32 %s15, %s22
    %p24 = scmp.eq.s32.totalorder %s23, 0
    %s26 = sadd.s32 %s25, 1
    %s27 = scalar_select %p24, %s25, %s26
    %p30 = pneg %p24
    %p31 = scmp.eq.s32.totalorder %s15, 1
    %p32 = por %p30, %p31
    %p33 = scmp.ne.s32.totalorder %s25, %s28
    %p34 = scmp.eq.s32.totalorder %s15, 0
    %p35 = por %p33, %p34
    %p36 = scmp.ne.s32.totalorder %s25, %s28
    %p37 = scmp.eq.s32.totalorder %s20, 1
    %p38 = por %p36, %p37
    %p39 = scmp.ne.s32.totalorder %s28, %s29
    %p40 = scmp.eq.s32.totalorder %s20, 0
    %p41 = por %p39, %p40
    %p42 = scmp.ne.s32.totalorder %s28, %s29
    %p43 = scmp.eq.s32.totalorder %s21, 1
    %p44 = por %p42, %p43
    %p46 = scmp.ne.s32.totalorder %s29, %s45
    %p47 = scmp.eq.s32.totalorder %s21, 0
    %p48 = por %p46, %p47
    %s49 = ssub.s32 %s15, %s22
    %p50 = scmp.eq.s32.totalorder %s49, 0
    %s52 = sadd.s32 %s51, 1
    %s53 = scalar_select %p50, %s51, %s52
    %p56 = pneg %p50
    %p57 = scmp.eq.s32.totalorder %s15, 1
    %p58 = por %p56, %p57
    %p59 = scmp.ne.s32.totalorder %s51, %s54
    %p60 = scmp.eq.s32.totalorder %s15, 0
    %p61 = por %p59, %p60
    %p62 = scmp.ne.s32.totalorder %s51, %s54
    %p63 = scmp.eq.s32.totalorder %s20, 1
    %p64 = por %p62, %p63
    %p65 = scmp.ne.s32.totalorder %s54, %s55
    %p66 = scmp.eq.s32.totalorder %s20, 0
    %p67 = por %p65, %p66
    %p68 = scmp.ne.s32.totalorder %s54, %s55
    %p69 = scmp.eq.s32.totalorder %s21, 1
    %p70 = por %p68, %p69
    %p72 = scmp.ne.s32.totalorder %s55, %s71
    %p73 = scmp.eq.s32.totalorder %s21, 0
    %p74 = por %p72, %p73
    %s75 = ssub.s32 %s15, %s22
    %p76 = scmp.eq.s32.totalorder %s75, 0
    %s78 = sadd.s32 %s77, 1
    %s79 = scalar_select %p76, %s77, %s78
    %p82 = pneg %p76
    %p83 = scmp.eq.s32.totalorder %s15, 1
    %p84 = por %p82, %p83
    %p85 = scmp.ne.s32.totalorder %s77, %s80
    %p86 = scmp.eq.s32.totalorder %s15, 0
    %p87 = por %p85, %p86
    %p88 = scmp.ne.s32.totalorder %s77, %s80
    %p89 = scmp.eq.s32.totalorder %s20, 1
    %p90 = por %p88, %p89
    %p91 = scmp.ne.s32.totalorder %s80, %s81
    %p92 = scmp.eq.s32.totalorder %s20, 0
    %p93 = por %p91, %p92
    %p94 = scmp.ne.s32.totalorder %s80, %s81
    %p95 = scmp.eq.s32.totalorder %s21, 1
    %p96 = por %p94, %p95
    %p98 = scmp.ne.s32.totalorder %s81, %s97
    %p99 = scmp.eq.s32.totalorder %s21, 0
    %p100 = por %p98, %p99
    %s102 = sadd.s32 %s101, 1
    %p105 = scmp.eq.s32.totalorder %s15, 1
    %p106 = scmp.ne.s32.totalorder %s101, %s103
    %p107 = scmp.eq.s32.totalorder %s15, 0
    %p108 = por %p106, %p107
    %p109 = scmp.ne.s32.totalorder %s101, %s103
    %p110 = scmp.eq.s32.totalorder %s20, 1
    %p111 = por %p109, %p110
    %p112 = scmp.ne.s32.totalorder %s103, %s104
    %p113 = scmp.eq.s32.totalorder %s20, 0
    %p114 = por %p112, %p113
    %p115 = scmp.ne.s32.totalorder %s103, %s104
    %p116 = scmp.eq.s32.totalorder %s21, 1
    %p117 = por %p115, %p116
    %p119 = scmp.ne.s32.totalorder %s104, %s118
    %p120 = scmp.eq.s32.totalorder %s21, 0
    %p121 = por %p119, %p120
    %s123 = sadd.s32 %s122, 1
    %p126 = scmp.eq.s32.totalorder %s15, 1
    %p127 = scmp.ne.s32.totalorder %s122, %s124
    %p128 = scmp.eq.s32.totalorder %s15, 0
    %p129 = por %p127, %p128
    %p130 = scmp.ne.s32.totalorder %s122, %s124
    %p131 = scmp.eq.s32.totalorder %s20, 1
    %p132 = por %p130, %p131
    %p133 = scmp.ne.s32.totalorder %s124, %s125
    %p134 = scmp.eq.s32.totalorder %s20, 0
    %p135 = por %p133, %p134
    %p136 = scmp.ne.s32.totalorder %s124, %s125
    %p137 = scmp.eq.s32.totalorder %s21, 1
    %p138 = por %p136, %p137
    %p140 = scmp.ne.s32.totalorder %s125, %s139
    %p141 = scmp.eq.s32.totalorder %s21, 0
    %p142 = por %p140, %p141
    %s144 = sadd.s32 %s143, 1
    %p147 = scmp.eq.s32.totalorder %s15, 1
    %p148 = scmp.ne.s32.totalorder %s143, %s145
    %p149 = scmp.eq.s32.totalorder %s15, 0
    %p150 = por %p148, %p149
    %p151 = scmp.ne.s32.totalorder %s143, %s145
    %p152 = scmp.eq.s32.totalorder %s20, 1
    %p153 = por %p151, %p152
    %p154 = scmp.ne.s32.totalorder %s145, %s146
    %p155 = scmp.eq.s32.totalorder %s20, 0
    %p156 = por %p154, %p155
    %p157 = scmp.ne.s32.totalorder %s145, %s146
    %p158 = scmp.eq.s32.totalorder %s21, 1
    %p159 = por %p157, %p158
    %p161 = scmp.ne.s32.totalorder %s146, %s160
    %p162 = scmp.eq.s32.totalorder %s21, 0
    %p163 = por %p161, %p162
    %s165 = sadd.s32 %s164, 1
    %p168 = scmp.eq.s32.totalorder %s15, 1
    %p169 = scmp.ne.s32.totalorder %s164, %s166
    %p170 = scmp.eq.s32.totalorder %s15, 0
    %p171 = por %p169, %p170
    %p172 = scmp.ne.s32.totalorder %s164, %s166
    %p173 = scmp.eq.s32.totalorder %s20, 1
    %p174 = por %p172, %p173
    %p175 = scmp.ne.s32.totalorder %s166, %s167
    %p176 = scmp.eq.s32.totalorder %s20, 0
    %p177 = por %p175, %p176
    %p178 = scmp.ne.s32.totalorder %s166, %s167
    %p179 = scmp.eq.s32.totalorder %s21, 1
    %p180 = por %p178, %p179
    %p182 = scmp.ne.s32.totalorder %s167, %s181
    %p183 = scmp.eq.s32.totalorder %s21, 0
    %p184 = por %p182, %p183
    %s185 = ssub.s32 %s15, %s22
    %p186 = scmp.eq.s32.totalorder %s185, 0
    %s188 = sadd.s32 %s187, 1
    %s189 = scalar_select %p186, %s187, %s188
    %p192 = pneg %p186
    %p193 = scmp.eq.s32.totalorder %s15, 1
    %p194 = por %p192, %p193
    %p195 = scmp.ne.s32.totalorder %s187, %s190
    %p196 = scmp.eq.s32.totalorder %s15, 0
    %p197 = por %p195, %p196
    %p198 = scmp.ne.s32.totalorder %s187, %s190
    %p199 = scmp.eq.s32.totalorder %s20, 1
    %p200 = por %p198, %p199
    %p201 = scmp.ne.s32.totalorder %s190, %s191
    %p202 = scmp.eq.s32.totalorder %s20, 0
    %p203 = por %p201, %p202
    %p204 = scmp.ne.s32.totalorder %s190, %s191
    %p205 = scmp.eq.s32.totalorder %s21, 1
    %p206 = por %p204, %p205
    %p208 = scmp.ne.s32.totalorder %s191, %s207
    %p209 = scmp.eq.s32.totalorder %s21, 0
    %p210 = por %p208, %p209
    %s211 = ssub.s32 %s15, %s22
    %p212 = scmp.eq.s32.totalorder %s211, 0
    %s214 = sadd.s32 %s213, 1
    %s215 = scalar_select %p212, %s213, %s214
    %p218 = pneg %p212
    %p219 = scmp.eq.s32.totalorder %s15, 1
    %p220 = por %p218, %p219
    %p221 = scmp.ne.s32.totalorder %s213, %s216
    %p222 = scmp.eq.s32.totalorder %s15, 0
    %p223 = por %p221, %p222
    %p224 = scmp.ne.s32.totalorder %s213, %s216
    %p225 = scmp.eq.s32.totalorder %s20, 1
    %p226 = por %p224, %p225
    %p227 = scmp.ne.s32.totalorder %s216, %s217
    %p228 = scmp.eq.s32.totalorder %s20, 0
    %p229 = por %p227, %p228
    %p230 = scmp.ne.s32.totalorder %s216, %s217
    %p231 = scmp.eq.s32.totalorder %s21, 1
    %p232 = por %p230, %p231
    %p234 = scmp.ne.s32.totalorder %s217, %s233
    %p235 = scmp.eq.s32.totalorder %s21, 0
    %p236 = por %p234, %p235
    %p237 = scmp.le.s32.totalorder 1, %s15
    %p238 = scmp.lt.s32.totalorder %s15, 3
    %p239 = pnand %p237, %p238
    %p240 = pneg %p239
    // Predicated region
    $region9: #{style_block_forward.1} parent=5 // pred_check
      _
    $region10: #{style_block_forward.1} parent=5 // pred_check_branch
      %242 = sbr.rel (%p239) target = $region12
    $region11: #{style_block_forward.1} parent=5 // pred_region
      %s243 = ssub.s32 %s15, 1
      // Predicated region
      $region13: #{style_block_forward.1} parent=11 // pred_check
        %p244 = pneg %p114
      $region14: #{style_block_forward.1} parent=11 // pred_check_branch
        %246 = sbr.rel (%p244) target = $region16
      $region15: #{style_block_forward.1} parent=11 // pred_region
        _
      $region16: #{style_block_forward.1} parent=11 // pred_fallthru
        _
      // Predicated region
      $region17: #{style_block_forward.1} parent=11 // pred_check
        %p247 = pneg %p135
      $region18: #{style_block_forward.1} parent=11 // pred_check_branch
        %249 = sbr.rel (%p247) target = $region20
      $region19: #{style_block_forward.1} parent=11 // pred_region
        _
      $region20: #{style_block_forward.1} parent=11 // pred_fallthru
        _
      // Predicated region
      $region21: #{style_block_forward.1} parent=11 // pred_check
        %p250 = pneg %p156
      $region22: #{style_block_forward.1} parent=11 // pred_check_branch
        %252 = sbr.rel (%p250) target = $region24
      $region23: #{style_block_forward.1} parent=11 // pred_region
        _
      $region24: #{style_block_forward.1} parent=11 // pred_fallthru
        _
      // Predicated region
      $region25: #{style_block_forward.1} parent=11 // pred_check
        %p253 = pneg %p177
      $region26: #{style_block_forward.1} parent=11 // pred_check_branch
        %255 = sbr.rel (%p253) target = $region28
      $region27: #{style_block_forward.1} parent=11 // pred_region
        _
      $region28: #{style_block_forward.1} parent=11 // pred_fallthru
        _
    $region12: #{style_block_forward.1} parent=5 // pred_fallthru
      _
    %p256 = scmp.lt.s32.totalorder %s15, 2
    // Predicated region
    $region29: #{style_block_forward.1} parent=5 // pred_check
      %p257 = pneg %p256
    $region30: #{style_block_forward.1} parent=5 // pred_check_branch
      %259 = sbr.rel (%p257) target = $region32
    $region31: #{style_block_forward.1} parent=5 // pred_region
      // Predicated region
      $region33: #{style_block_forward.1} parent=31 // pred_check
        %p260 = pneg %p35
      $region34: #{style_block_forward.1} parent=31 // pred_check_branch
        %262 = sbr.rel (%p260) target = $region36
      $region35: #{style_block_forward.1} parent=31 // pred_region
        %p263 = scmp.lt.s32.totalorder %s15, 1
        %s264 = scalar_select %p263, %s15, 1
        %s265 = smul.addr %s264, 4
        %s266 = scalar_lea.vmem %s0, %s265
      $region36: #{style_block_forward.1} parent=31 // pred_fallthru
        _
      // Predicated region
      $region37: #{style_block_forward.1} parent=31 // pred_check
        %p267 = pneg %p61
      $region38: #{style_block_forward.1} parent=31 // pred_check_branch
        %269 = sbr.rel (%p267) target = $region40
      $region39: #{style_block_forward.1} parent=31 // pred_region
        %p270 = scmp.lt.s32.totalorder %s15, 1
        %s271 = scalar_select %p270, %s15, 1
        %s272 = smul.addr %s271, 8
        %s273 = scalar_lea.vmem %s1, %s272
      $region40: #{style_block_forward.1} parent=31 // pred_fallthru
        _
      // Predicated region
      $region41: #{style_block_forward.1} parent=31 // pred_check
        %p274 = pneg %p87
      $region42: #{style_block_forward.1} parent=31 // pred_check_branch
        %276 = sbr.rel (%p274) target = $region44
      $region43: #{style_block_forward.1} parent=31 // pred_region
        %p277 = scmp.lt.s32.totalorder %s15, 1
        %s278 = scalar_select %p277, %s15, 1
        %s279 = smul.addr %s278, 3
        %s280 = smul.addr %s279, 4
        %s281 = scalar_lea.vmem %s2, %s280
      $region44: #{style_block_forward.1} parent=31 // pred_fallthru
        _
      // Predicated region
      $region45: #{style_block_forward.1} parent=31 // pred_check
        %p282 = pneg %p197
      $region46: #{style_block_forward.1} parent=31 // pred_check_branch
        %284 = sbr.rel (%p282) target = $region48
      $region47: #{style_block_forward.1} parent=31 // pred_region
        %p285 = scmp.lt.s32.totalorder %s15, 1
        %s286 = scalar_select %p285, %s15, 1
        %s287 = smul.addr %s286, 2
        %s288 = scalar_lea.vmem %s7, %s287
      $region48: #{style_block_forward.1} parent=31 // pred_fallthru
        _
    $region32: #{style_block_forward.1} parent=5 // pred_fallthru
      _
    %p289 = scmp.le.s32.totalorder 1, %s15
    %p290 = scmp.lt.s32.totalorder %s15, 3
    %p291 = pnand %p289, %p290
    %p292 = pneg %p291
    // Predicated region
    $region49: #{style_block_forward.1} parent=5 // pred_check
      _
    $region50: #{style_block_forward.1} parent=5 // pred_check_branch
      %294 = sbr.rel (%p291) target = $region52
    $region51: #{style_block_forward.1} parent=5 // pred_region
      %s295 = ssub.s32 %s15, 1
      %p296 = scmp.lt.s32.totalorder %s20, 1
      %s297 = scalar_select %p296, %s20, 1
      %s298 = smul.addr %s297, 4
      %s299 = scalar_lea.vmem %s0, %s298
      %p300 = pneg %p41
      %p301 = pneg %p38
      %p302 = scmp.lt.s32.totalorder %s20, 1
      %s303 = scalar_select %p302, %s20, 1
      %s304 = smul.addr %s303, 8
      %s305 = scalar_lea.vmem %s1, %s304
      %p306 = pneg %p67
      %p307 = pneg %p64
      %p308 = scmp.lt.s32.totalorder %s20, 1
      %s309 = scalar_select %p308, %s20, 1
      %s310 = smul.addr %s309, 3
      %s311 = smul.addr %s310, 4
      %s312 = scalar_lea.vmem %s2, %s311
      %p313 = pneg %p93
      %p314 = pneg %p90
      %p315 = pneg %p114
      %p316 = pneg %p111
      %p317 = pneg %p135
      %p318 = pneg %p132
      %p319 = pneg %p156
      %p320 = pneg %p153
      %p321 = pneg %p177
      %p322 = pneg %p174
      %p323 = scmp.lt.s32.totalorder %s20, 1
      %s324 = scalar_select %p323, %s20, 1
      %s325 = smul.addr %s324, 2
      %s326 = scalar_lea.vmem %s7, %s325
      %p327 = pneg %p203
      %p328 = pneg %p200
      %p329 = pneg %p229
      %p330 = pneg %p226
      %p331 = scmp.lt.s32.totalorder %s20, 1
      %s332 = scalar_select %p331, %s20, 1
      %s333 = smul.addr %s332, 2
      %s334 = smul.addr %s333, 8
      %s335 = scalar_lea.vmem %s8, %s334
      %p336 = scmp.lt.s32.totalorder %s20, 1
      %s337 = scalar_select %p336, %s20, 1
      %s338 = smul.addr %s337, 4
      %s339 = scalar_lea.vmem %s0, %s338
      %p340 = scmp.lt.s32.totalorder %s20, 1
      %s341 = scalar_select %p340, %s20, 1
      %s342 = smul.addr %s341, 8
      %s343 = scalar_lea.vmem %s1, %s342
      %p344 = scmp.lt.s32.totalorder %s20, 1
      %s345 = scalar_select %p344, %s20, 1
      %s346 = smul.addr %s345, 3
      %s347 = smul.addr %s346, 4
      %s348 = scalar_lea.vmem %s2, %s347
      %p349 = scmp.lt.s32.totalorder %s20, 1
      %s350 = scalar_select %p349, %s20, 1
      %s351 = smul.addr %s350, 2
      %s352 = scalar_lea.vmem %s7, %s351
      %p353 = scmp.lt.s32.totalorder %s20, 1
      %s354 = scalar_select %p353, %s20, 1
      %s355 = smul.addr %s354, 2
      %s356 = smul.addr %s355, 8
      %s357 = scalar_lea.vmem %s8, %s356
      %v358 = vld [vmem:[%s348] sm:$0xff]
      %v359 = vld [vmem:[%s348 + $0x8] sm:$0xf]
      %v360 = vld [vmem:[%s339] sm:$0xf]
      %362 = vset.pattern.permute.xlu0 0
      %363 = vperm.xlu0 %362, %v360
      %v364 = vpop.permute.xlu0 %363
      %v366 = vunpack.c.l.s4 839922192
      %v367 = vunpack.c.0.s8 %v366
      %v368 = vlaneseq
      %v369 = vshrl.u32 %v368, 7
      %v370 = vsub.s32 %v367, %v369
      %v371 = vrot.slane %v364, %v370
      %v373 = vmul.f32 %v358, %v371
      %v374 = vmul.f32 %v359, %v371
      %v375 = vld [vmem:[%s3] sm:$0xff]
      %v376 = vld [vmem:[%s3 + $0x8] sm:$0xff]
      %v377 = vld [vmem:[%s3 + $0x10] sm:$0x1]
      %v378 = vld [vmem:[%s3 + $0x18] sm:$0x1]
      %v379 = vlaneseq
      %v380 = vshrl.u32 %v379, 7
      %v381 = vsub.s32 0, %v380
      %v382 = vrot.slane %v375, %v381
      %v383 = vlaneseq
      %v384 = vshrl.u32 %v383, 7
      %v385 = vsub.s32 0, %v384
      %v386 = vrot.slane %v376, %v385
      %v389 = vcombine.low %v382, %v386
      %v391 = vmul.f32 %v373, %v389
      %v392 = vld [vmem:[%s4] sm:$0xff]
      %v393 = vlaneseq
      %v394 = vshrl.u32 %v393, 7
      %v395 = vsub.s32 1, %v394
      %v396 = vrot.slane %v375, %v395
      %v397 = vlaneseq
      %v398 = vshrl.u32 %v397, 7
      %v399 = vsub.s32 1, %v398
      %v400 = vrot.slane %v376, %v399
      %v403 = vcombine.low %v396, %v400
      %404 = vrot.lane.b32.xlu0 %v403, 1
      %v405 = vpop.permute.xlu0 %404
      %v406 = vrot.slane %v405, 4
      %vm407 = vcmask 7168
      %v408 = vsel %vm407, %v406, %v405
      %v411 = vmul.f32 %v373, %v408
      %v412 = vmul.f32 %v374, %v406
      %s413 = scalar_lea.vmem %s4, 8
      %v414 = vld [vmem:[%s413] sm:$0xff]
      %v417 = vcombine.high %v411, %v411
      %418 = vrot.lane.b32.xlu0 %v411, 127
      %v419 = vpop.permute.xlu0 %418
      %420 = vrot.lane.b32.xlu0 %v417, 127
      %v421 = vpop.permute.xlu0 %420
      %422 = vrot.lane.b32.xlu0 %v412, 127
      %v423 = vpop.permute.xlu0 %422
      %vm424 = vcmask 1039360
      %v425 = vsel %vm424, %v419, %v421
      %v426 = vsel %vm424, %v421, %v423
      %vm427 = vcmask 31744
      %v429 = vsel %vm427, %v414, 0
      %vm431 = vcmask 1043456
      %v432 = vsel %vm431, %v425, 0
      %v434 = vsel %vm431, %v426, 0
      %436 = vmatprep.subr.mxu0 0.0
      %437 = vmatpush1.msra.mxu0 0.0
      %438 = vmatprep.subr.mxu0 0.0
      %439 = vmatpush1.msra.mxu0 0.0
      %440 = vmatprep.subr.mxu0 0.0
      %441 = vmatpush1.msra.mxu0 0.0
      %442 = vmatprep.subr.mxu0 0.0
      %443 = vmatpush1.msra.mxu0 0.0
      %444 = vmatprep.subr.mxu0 0.0
      %445 = vmatpush1.msra.mxu0 0.0
      %446 = vmatprep.subr.mxu0 0.0
      %447 = vmatpush1.msra.mxu0 0.0
      %448 = vmatprep.subr.mxu0 0.0
      %449 = vmatpush1.msra.mxu0 0.0
      %450 = vmatprep.subr.mxu0 0.0
      %451 = vmatpush1.msra.mxu0 0.0
      %452 = vmatprep.subr.mxu0 0.0
      %453 = vmatpush1.msra.mxu0 0.0
      %454 = vmatprep.subr.mxu0 0.0
      %455 = vmatpush1.msra.mxu0 0.0
      %456 = vmatprep.subr.mxu0 0.0
      %457 = vmatpush1.msra.mxu0 0.0
      %458 = vmatprep.subr.mxu0 0.0
      %459 = vmatpush1.msra.mxu0 0.0
      %460 = vmatprep.subr.mxu0 0.0
      %461 = vmatpush1.msra.mxu0 0.0
      %462 = vmatprep.subr.mxu0 0.0
      %463 = vmatpush1.msra.mxu0 0.0
      %464 = vmatprep.subr.mxu0 0.0
      %465 = vmatpush1.msra.mxu0 0.0
      %466 = vmatprep.subr.mxu0 %v434
      %467 = vmatpush1.msra.mxu0 %v432
      %468 = vmatprep.subr.mxu0 0.0
      %469 = vmatpush2.msra.mxu0 0.0
      %470 = vmatprep.subr.mxu0 0.0
      %471 = vmatpush2.msra.mxu0 0.0
      %472 = vmatprep.subr.mxu0 0.0
      %473 = vmatpush2.msra.mxu0 0.0
      %474 = vmatprep.subr.mxu0 0.0
      %475 = vmatpush2.msra.mxu0 0.0
      %476 = vmatprep.subr.mxu0 0.0
      %477 = vmatpush2.msra.mxu0 0.0
      %478 = vmatprep.subr.mxu0 0.0
      %479 = vmatpush2.msra.mxu0 0.0
      %480 = vmatprep.subr.mxu0 0.0
      %481 = vmatpush2.msra.mxu0 0.0
      %482 = vmatprep.subr.mxu0 0.0
      %483 = vmatpush2.msra.mxu0 0.0
      %484 = vmatprep.subr.mxu0 0.0
      %485 = vmatpush2.msra.mxu0 0.0
      %486 = vmatprep.subr.mxu0 0.0
      %487 = vmatpush2.msra.mxu0 0.0
      %488 = vmatprep.subr.mxu0 0.0
      %489 = vmatpush2.msra.mxu0 0.0
      %490 = vmatprep.subr.mxu0 0.0
      %491 = vmatpush2.msra.mxu0 0.0
      %492 = vmatprep.subr.mxu0 0.0
      %493 = vmatpush2.msra.mxu0 0.0
      %494 = vmatprep.subr.mxu0 0.0
      %495 = vmatpush2.msra.mxu0 0.0
      %496 = vmatprep.subr.mxu0 0.0
      %497 = vmatpush2.msra.mxu0 0.0
      %498 = vmatprep.subr.mxu0 0.0
      %499 = vmatpush2.msra.mxu0 0.0
      %500 = vmatprep.mubr.f32.mxu0 0.0
      %501 = vmatmul.mubr.f32.gmra.mxu0 %v429
      %v502 = vpop.f32.mrf.mxu0
      %v503 = vadd.f32 0.0, %v502
      %v504 = vpop.f32.mrf.mxu0
      %v505 = vadd.f32 0.0, %v504
      %506 = vdwg.mxu0
      %v508 = vcombine.high %v391, %v391
      %v510 = vsel %vm427, %v392, 0
      %v512 = vsel %vm431, %v391, 0
      %v514 = vsel %vm431, %v508, 0
      %516 = vmatprep.subr.mxu0 0.0
      %517 = vmatpush1.msra.mxu0 0.0
      %518 = vmatprep.subr.mxu0 0.0
      %519 = vmatpush1.msra.mxu0 0.0
      %520 = vmatprep.subr.mxu0 0.0
      %521 = vmatpush1.msra.mxu0 0.0
      %522 = vmatprep.subr.mxu0 0.0
      %523 = vmatpush1.msra.mxu0 0.0
      %524 = vmatprep.subr.mxu0 0.0
      %525 = vmatpush1.msra.mxu0 0.0
      %526 = vmatprep.subr.mxu0 0.0
      %527 = vmatpush1.msra.mxu0 0.0
      %528 = vmatprep.subr.mxu0 0.0
      %529 = vmatpush1.msra.mxu0 0.0
      %530 = vmatprep.subr.mxu0 0.0
      %531 = vmatpush1.msra.mxu0 0.0
      %532 = vmatprep.subr.mxu0 0.0
      %533 = vmatpush1.msra.mxu0 0.0
      %534 = vmatprep.subr.mxu0 0.0
      %535 = vmatpush1.msra.mxu0 0.0
      %536 = vmatprep.subr.mxu0 0.0
      %537 = vmatpush1.msra.mxu0 0.0
      %538 = vmatprep.subr.mxu0 0.0
      %539 = vmatpush1.msra.mxu0 0.0
      %540 = vmatprep.subr.mxu0 0.0
      %541 = vmatpush1.msra.mxu0 0.0
      %542 = vmatprep.subr.mxu0 0.0
      %543 = vmatpush1.msra.mxu0 0.0
      %544 = vmatprep.subr.mxu0 0.0
      %545 = vmatpush1.msra.mxu0 0.0
      %546 = vmatprep.subr.mxu0 %v514
      %547 = vmatpush1.msra.mxu0 %v512
      %548 = vmatprep.subr.mxu0 0.0
      %549 = vmatpush2.msra.mxu0 0.0
      %550 = vmatprep.subr.mxu0 0.0
      %551 = vmatpush2.msra.mxu0 0.0
      %552 = vmatprep.subr.mxu0 0.0
      %553 = vmatpush2.msra.mxu0 0.0
      %554 = vmatprep.subr.mxu0 0.0
      %555 = vmatpush2.msra.mxu0 0.0
      %556 = vmatprep.subr.mxu0 0.0
      %557 = vmatpush2.msra.mxu0 0.0
      %558 = vmatprep.subr.mxu0 0.0
      %559 = vmatpush2.msra.mxu0 0.0
      %560 = vmatprep.subr.mxu0 0.0
      %561 = vmatpush2.msra.mxu0 0.0
      %562 = vmatprep.subr.mxu0 0.0
      %563 = vmatpush2.msra.mxu0 0.0
      %564 = vmatprep.subr.mxu0 0.0
      %565 = vmatpush2.msra.mxu0 0.0
      %566 = vmatprep.subr.mxu0 0.0
      %567 = vmatpush2.msra.mxu0 0.0
      %568 = vmatprep.subr.mxu0 0.0
      %569 = vmatpush2.msra.mxu0 0.0
      %570 = vmatprep.subr.mxu0 0.0
      %571 = vmatpush2.msra.mxu0 0.0
      %572 = vmatprep.subr.mxu0 0.0
      %573 = vmatpush2.msra.mxu0 0.0
      %574 = vmatprep.subr.mxu0 0.0
      %575 = vmatpush2.msra.mxu0 0.0
      %576 = vmatprep.subr.mxu0 0.0
      %577 = vmatpush2.msra.mxu0 0.0
      %578 = vmatprep.subr.mxu0 0.0
      %579 = vmatpush2.msra.mxu0 0.0
      %580 = vmatprep.mubr.f32.mxu0 0.0
      %581 = vmatmul.mubr.f32.gmra.mxu0 %v510
      %v582 = vpop.f32.mrf.mxu0
      %v583 = vadd.f32 %v503, %v582
      %v584 = vpop.f32.mrf.mxu0
      %v585 = vadd.f32 %v505, %v584
      %586 = vdwg.mxu0
      %v587 = vlaneseq
      %v588 = vshrl.u32 %v587, 7
      %v589 = vsub.s32 2, %v588
      %v590 = vrot.slane %v375, %v589
      %v591 = vlaneseq
      %v592 = vshrl.u32 %v591, 7
      %v593 = vsub.s32 2, %v592
      %v594 = vrot.slane %v376, %v593
      %v597 = vcombine.low %v590, %v594
      %598 = vrot.lane.b32.xlu0 %v597, 2
      %v599 = vpop.permute.xlu0 %598
      %v600 = vrot.slane %v599, 4
      %vm601 = vcmask 15360
      %v602 = vsel %vm601, %v600, %v599
      %v605 = vmul.f32 %v373, %v602
      %v606 = vmul.f32 %v374, %v600
      %s607 = scalar_lea.vmem %s4, 16
      %v608 = vld [vmem:[%s607] sm:$0xff]
      %v611 = vcombine.high %v605, %v605
      %612 = vrot.lane.b32.xlu0 %v605, 126
      %v613 = vpop.permute.xlu0 %612
      %614 = vrot.lane.b32.xlu0 %v611, 126
      %v615 = vpop.permute.xlu0 %614
      %616 = vrot.lane.b32.xlu0 %v606, 126
      %v617 = vpop.permute.xlu0 %616
      %vm618 = vcmask 1031168
      %v619 = vsel %vm618, %v613, %v615
      %v620 = vsel %vm618, %v615, %v617
      %v622 = vsel %vm427, %v608, 0
      %v624 = vsel %vm431, %v619, 0
      %v626 = vsel %vm431, %v620, 0
      %628 = vmatprep.subr.mxu0 0.0
      %629 = vmatpush1.msra.mxu0 0.0
      %630 = vmatprep.subr.mxu0 0.0
      %631 = vmatpush1.msra.mxu0 0.0
      %632 = vmatprep.subr.mxu0 0.0
      %633 = vmatpush1.msra.mxu0 0.0
      %634 = vmatprep.subr.mxu0 0.0
      %635 = vmatpush1.msra.mxu0 0.0
      %636 = vmatprep.subr.mxu0 0.0
      %637 = vmatpush1.msra.mxu0 0.0
      %638 = vmatprep.subr.mxu0 0.0
      %639 = vmatpush1.msra.mxu0 0.0
      %640 = vmatprep.subr.mxu0 0.0
      %641 = vmatpush1.msra.mxu0 0.0
      %642 = vmatprep.subr.mxu0 0.0
      %643 = vmatpush1.msra.mxu0 0.0
      %644 = vmatprep.subr.mxu0 0.0
      %645 = vmatpush1.msra.mxu0 0.0
      %646 = vmatprep.subr.mxu0 0.0
      %647 = vmatpush1.msra.mxu0 0.0
      %648 = vmatprep.subr.mxu0 0.0
      %649 = vmatpush1.msra.mxu0 0.0
      %650 = vmatprep.subr.mxu0 0.0
      %651 = vmatpush1.msra.mxu0 0.0
      %652 = vmatprep.subr.mxu0 0.0
      %653 = vmatpush1.msra.mxu0 0.0
      %654 = vmatprep.subr.mxu0 0.0
      %655 = vmatpush1.msra.mxu0 0.0
      %656 = vmatprep.subr.mxu0 0.0
      %657 = vmatpush1.msra.mxu0 0.0
      %658 = vmatprep.subr.mxu0 %v626
      %659 = vmatpush1.msra.mxu0 %v624
      %660 = vmatprep.subr.mxu0 0.0
      %661 = vmatpush2.msra.mxu0 0.0
      %662 = vmatprep.subr.mxu0 0.0
      %663 = vmatpush2.msra.mxu0 0.0
      %664 = vmatprep.subr.mxu0 0.0
      %665 = vmatpush2.msra.mxu0 0.0
      %666 = vmatprep.subr.mxu0 0.0
      %667 = vmatpush2.msra.mxu0 0.0
      %668 = vmatprep.subr.mxu0 0.0
      %669 = vmatpush2.msra.mxu0 0.0
      %670 = vmatprep.subr.mxu0 0.0
      %671 = vmatpush2.msra.mxu0 0.0
      %672 = vmatprep.subr.mxu0 0.0
      %673 = vmatpush2.msra.mxu0 0.0
      %674 = vmatprep.subr.mxu0 0.0
      %675 = vmatpush2.msra.mxu0 0.0
      %676 = vmatprep.subr.mxu0 0.0
      %677 = vmatpush2.msra.mxu0 0.0
      %678 = vmatprep.subr.mxu0 0.0
      %679 = vmatpush2.msra.mxu0 0.0
      %680 = vmatprep.subr.mxu0 0.0
      %681 = vmatpush2.msra.mxu0 0.0
      %682 = vmatprep.subr.mxu0 0.0
      %683 = vmatpush2.msra.mxu0 0.0
      %684 = vmatprep.subr.mxu0 0.0
      %685 = vmatpush2.msra.mxu0 0.0
      %686 = vmatprep.subr.mxu0 0.0
      %687 = vmatpush2.msra.mxu0 0.0
      %688 = vmatprep.subr.mxu0 0.0
      %689 = vmatpush2.msra.mxu0 0.0
      %690 = vmatprep.subr.mxu0 0.0
      %691 = vmatpush2.msra.mxu0 0.0
      %692 = vmatprep.mubr.f32.mxu0 0.0
      %693 = vmatmul.mubr.f32.gmra.mxu0 %v622
      %v694 = vpop.f32.mrf.mxu0
      %v695 = vadd.f32 0.0, %v694
      %v696 = vpop.f32.mrf.mxu0
      %v697 = vadd.f32 0.0, %v696
      %698 = vdwg.mxu0
      %v699 = vadd.f32 %v583, %v695
      %v700 = vadd.f32 %v585, %v697
      %v701 = vlaneseq
      %v702 = vshrl.u32 %v701, 7
      %v703 = vsub.s32 3, %v702
      %v704 = vrot.slane %v375, %v703
      %v705 = vlaneseq
      %v706 = vshrl.u32 %v705, 7
      %v707 = vsub.s32 3, %v706
      %v708 = vrot.slane %v376, %v707
      %v711 = vcombine.low %v704, %v708
      %712 = vrot.lane.b32.xlu0 %v711, 16
      %v713 = vpop.permute.xlu0 %712
      %v714 = vrot.slane %v713, 4
      %vm715 = vcmask 130048
      %v716 = vsel %vm715, %v714, %v713
      %v719 = vmul.f32 %v373, %v716
      %v720 = vmul.f32 %v374, %v714
      %s721 = scalar_lea.vmem %s4, 24
      %v722 = vld [vmem:[%s721] sm:$0xff]
      %v725 = vcombine.high %v719, %v719
      %726 = vrot.lane.b32.xlu0 %v719, 112
      %v727 = vpop.permute.xlu0 %726
      %728 = vrot.lane.b32.xlu0 %v725, 112
      %v729 = vpop.permute.xlu0 %728
      %730 = vrot.lane.b32.xlu0 %v720, 112
      %v731 = vpop.permute.xlu0 %730
      %vm732 = vcmask 916480
      %v733 = vsel %vm732, %v727, %v729
      %v734 = vsel %vm732, %v729, %v731
      %v736 = vsel %vm427, %v722, 0
      %v738 = vsel %vm431, %v733, 0
      %v740 = vsel %vm431, %v734, 0
      %742 = vmatprep.subr.mxu0 0.0
      %743 = vmatpush1.msra.mxu0 0.0
      %744 = vmatprep.subr.mxu0 0.0
      %745 = vmatpush1.msra.mxu0 0.0
      %746 = vmatprep.subr.mxu0 0.0
      %747 = vmatpush1.msra.mxu0 0.0
      %748 = vmatprep.subr.mxu0 0.0
      %749 = vmatpush1.msra.mxu0 0.0
      %750 = vmatprep.subr.mxu0 0.0
      %751 = vmatpush1.msra.mxu0 0.0
      %752 = vmatprep.subr.mxu0 0.0
      %753 = vmatpush1.msra.mxu0 0.0
      %754 = vmatprep.subr.mxu0 0.0
      %755 = vmatpush1.msra.mxu0 0.0
      %756 = vmatprep.subr.mxu0 0.0
      %757 = vmatpush1.msra.mxu0 0.0
      %758 = vmatprep.subr.mxu0 0.0
      %759 = vmatpush1.msra.mxu0 0.0
      %760 = vmatprep.subr.mxu0 0.0
      %761 = vmatpush1.msra.mxu0 0.0
      %762 = vmatprep.subr.mxu0 0.0
      %763 = vmatpush1.msra.mxu0 0.0
      %764 = vmatprep.subr.mxu0 0.0
      %765 = vmatpush1.msra.mxu0 0.0
      %766 = vmatprep.subr.mxu0 0.0
      %767 = vmatpush1.msra.mxu0 0.0
      %768 = vmatprep.subr.mxu0 0.0
      %769 = vmatpush1.msra.mxu0 0.0
      %770 = vmatprep.subr.mxu0 0.0
      %771 = vmatpush1.msra.mxu0 0.0
      %772 = vmatprep.subr.mxu0 %v740
      %773 = vmatpush1.msra.mxu0 %v738
      %774 = vmatprep.subr.mxu0 0.0
      %775 = vmatpush2.msra.mxu0 0.0
      %776 = vmatprep.subr.mxu0 0.0
      %777 = vmatpush2.msra.mxu0 0.0
      %778 = vmatprep.subr.mxu0 0.0
      %779 = vmatpush2.msra.mxu0 0.0
      %780 = vmatprep.subr.mxu0 0.0
      %781 = vmatpush2.msra.mxu0 0.0
      %782 = vmatprep.subr.mxu0 0.0
      %783 = vmatpush2.msra.mxu0 0.0
      %784 = vmatprep.subr.mxu0 0.0
      %785 = vmatpush2.msra.mxu0 0.0
      %786 = vmatprep.subr.mxu0 0.0
      %787 = vmatpush2.msra.mxu0 0.0
      %788 = vmatprep.subr.mxu0 0.0
      %789 = vmatpush2.msra.mxu0 0.0
      %790 = vmatprep.subr.mxu0 0.0
      %791 = vmatpush2.msra.mxu0 0.0
      %792 = vmatprep.subr.mxu0 0.0
      %793 = vmatpush2.msra.mxu0 0.0
      %794 = vmatprep.subr.mxu0 0.0
      %795 = vmatpush2.msra.mxu0 0.0
      %796 = vmatprep.subr.mxu0 0.0
      %797 = vmatpush2.msra.mxu0 0.0
      %798 = vmatprep.subr.mxu0 0.0
      %799 = vmatpush2.msra.mxu0 0.0
      %800 = vmatprep.subr.mxu0 0.0
      %801 = vmatpush2.msra.mxu0 0.0
      %802 = vmatprep.subr.mxu0 0.0
      %803 = vmatpush2.msra.mxu0 0.0
      %804 = vmatprep.subr.mxu0 0.0
      %805 = vmatpush2.msra.mxu0 0.0
      %806 = vmatprep.mubr.f32.mxu0 0.0
      %807 = vmatmul.mubr.f32.gmra.mxu0 %v736
      %v808 = vpop.f32.mrf.mxu0
      %v809 = vadd.f32 0.0, %v808
      %v810 = vpop.f32.mrf.mxu0
      %v811 = vadd.f32 0.0, %v810
      %812 = vdwg.mxu0
      %v813 = vadd.f32 %v699, %v809
      %v814 = vadd.f32 %v700, %v811
      %s815 = scalar_lea.vmem %s4, 32
      %v816 = vld [vmem:[%s815] sm:$0xff]
      %v819 = vcombine.high %v373, %v373
      %820 = vrot.lane.b32.xlu0 %v373, 111
      %v821 = vpop.permute.xlu0 %820
      %822 = vrot.lane.b32.xlu0 %v819, 111
      %v823 = vpop.permute.xlu0 %822
      %824 = vrot.lane.b32.xlu0 %v374, 111
      %v825 = vpop.permute.xlu0 %824
      %vm826 = vcmask 908288
      %v827 = vsel %vm826, %v821, %v823
      %v828 = vsel %vm826, %v823, %v825
      %v830 = vsel %vm427, %v816, 0
      %v832 = vsel %vm431, %v827, 0
      %v834 = vsel %vm431, %v828, 0
      %836 = vmatprep.subr.mxu0 0.0
      %837 = vmatpush1.msra.mxu0 0.0
      %838 = vmatprep.subr.mxu0 0.0
      %839 = vmatpush1.msra.mxu0 0.0
      %840 = vmatprep.subr.mxu0 0.0
      %841 = vmatpush1.msra.mxu0 0.0
      %842 = vmatprep.subr.mxu0 0.0
      %843 = vmatpush1.msra.mxu0 0.0
      %844 = vmatprep.subr.mxu0 0.0
      %845 = vmatpush1.msra.mxu0 0.0
      %846 = vmatprep.subr.mxu0 0.0
      %847 = vmatpush1.msra.mxu0 0.0
      %848 = vmatprep.subr.mxu0 0.0
      %849 = vmatpush1.msra.mxu0 0.0
      %850 = vmatprep.subr.mxu0 0.0
      %851 = vmatpush1.msra.mxu0 0.0
      %852 = vmatprep.subr.mxu0 0.0
      %853 = vmatpush1.msra.mxu0 0.0
      %854 = vmatprep.subr.mxu0 0.0
      %855 = vmatpush1.msra.mxu0 0.0
      %856 = vmatprep.subr.mxu0 0.0
      %857 = vmatpush1.msra.mxu0 0.0
      %858 = vmatprep.subr.mxu0 0.0
      %859 = vmatpush1.msra.mxu0 0.0
      %860 = vmatprep.subr.mxu0 0.0
      %861 = vmatpush1.msra.mxu0 0.0
      %862 = vmatprep.subr.mxu0 0.0
      %863 = vmatpush1.msra.mxu0 0.0
      %864 = vmatprep.subr.mxu0 0.0
      %865 = vmatpush1.msra.mxu0 0.0
      %866 = vmatprep.subr.mxu0 %v834
      %867 = vmatpush1.msra.mxu0 %v832
      %868 = vmatprep.subr.mxu0 0.0
      %869 = vmatpush2.msra.mxu0 0.0
      %870 = vmatprep.subr.mxu0 0.0
      %871 = vmatpush2.msra.mxu0 0.0
      %872 = vmatprep.subr.mxu0 0.0
      %873 = vmatpush2.msra.mxu0 0.0
      %874 = vmatprep.subr.mxu0 0.0
      %875 = vmatpush2.msra.mxu0 0.0
      %876 = vmatprep.subr.mxu0 0.0
      %877 = vmatpush2.msra.mxu0 0.0
      %878 = vmatprep.subr.mxu0 0.0
      %879 = vmatpush2.msra.mxu0 0.0
      %880 = vmatprep.subr.mxu0 0.0
      %881 = vmatpush2.msra.mxu0 0.0
      %882 = vmatprep.subr.mxu0 0.0
      %883 = vmatpush2.msra.mxu0 0.0
      %884 = vmatprep.subr.mxu0 0.0
      %885 = vmatpush2.msra.mxu0 0.0
      %886 = vmatprep.subr.mxu0 0.0
      %887 = vmatpush2.msra.mxu0 0.0
      %888 = vmatprep.subr.mxu0 0.0
      %889 = vmatpush2.msra.mxu0 0.0
      %890 = vmatprep.subr.mxu0 0.0
      %891 = vmatpush2.msra.mxu0 0.0
      %892 = vmatprep.subr.mxu0 0.0
      %893 = vmatpush2.msra.mxu0 0.0
      %894 = vmatprep.subr.mxu0 0.0
      %895 = vmatpush2.msra.mxu0 0.0
      %896 = vmatprep.subr.mxu0 0.0
      %897 = vmatpush2.msra.mxu0 0.0
      %898 = vmatprep.subr.mxu0 0.0
      %899 = vmatpush2.msra.mxu0 0.0
      %900 = vmatprep.mubr.f32.mxu0 0.0
      %901 = vmatmul.mubr.f32.gmra.mxu0 %v830
      %v902 = vpop.f32.mrf.mxu0
      %v903 = vadd.f32 0.0, %v902
      %v904 = vpop.f32.mrf.mxu0
      %v905 = vadd.f32 0.0, %v904
      %906 = vdwg.mxu0
      %v907 = vadd.f32 %v813, %v903
      %v908 = vadd.f32 %v814, %v905
      %v909 = vlaneseq
      %v910 = vshrl.u32 %v909, 7
      %v911 = vsub.s32 5, %v910
      %v912 = vrot.slane %v375, %v911
      %v913 = vlaneseq
      %v914 = vshrl.u32 %v913, 7
      %v915 = vsub.s32 5, %v914
      %v916 = vrot.slane %v376, %v915
      %v919 = vcombine.low %v912, %v916
      %920 = vrot.lane.b32.xlu0 %v919, 18
      %v921 = vpop.permute.xlu0 %920
      %v922 = vrot.slane %v921, 4
      %vm923 = vcmask 146432
      %v924 = vsel %vm923, %v922, %v921
      %v927 = vmul.f32 %v373, %v924
      %v928 = vmul.f32 %v374, %v922
      %s929 = scalar_lea.vmem %s4, 40
      %v930 = vld [vmem:[%s929] sm:$0xff]
      %v933 = vcombine.high %v927, %v927
      %934 = vrot.lane.b32.xlu0 %v927, 110
      %v935 = vpop.permute.xlu0 %934
      %936 = vrot.lane.b32.xlu0 %v933, 110
      %v937 = vpop.permute.xlu0 %936
      %938 = vrot.lane.b32.xlu0 %v928, 110
      %v939 = vpop.permute.xlu0 %938
      %vm940 = vcmask 900096
      %v941 = vsel %vm940, %v935, %v937
      %v942 = vsel %vm940, %v937, %v939
      %v944 = vsel %vm427, %v930, 0
      %v946 = vsel %vm431, %v941, 0
      %v948 = vsel %vm431, %v942, 0
      %950 = vmatprep.subr.mxu0 0.0
      %951 = vmatpush1.msra.mxu0 0.0
      %952 = vmatprep.subr.mxu0 0.0
      %953 = vmatpush1.msra.mxu0 0.0
      %954 = vmatprep.subr.mxu0 0.0
      %955 = vmatpush1.msra.mxu0 0.0
      %956 = vmatprep.subr.mxu0 0.0
      %957 = vmatpush1.msra.mxu0 0.0
      %958 = vmatprep.subr.mxu0 0.0
      %959 = vmatpush1.msra.mxu0 0.0
      %960 = vmatprep.subr.mxu0 0.0
      %961 = vmatpush1.msra.mxu0 0.0
      %962 = vmatprep.subr.mxu0 0.0
      %963 = vmatpush1.msra.mxu0 0.0
      %964 = vmatprep.subr.mxu0 0.0
      %965 = vmatpush1.msra.mxu0 0.0
      %966 = vmatprep.subr.mxu0 0.0
      %967 = vmatpush1.msra.mxu0 0.0
      %968 = vmatprep.subr.mxu0 0.0
      %969 = vmatpush1.msra.mxu0 0.0
      %970 = vmatprep.subr.mxu0 0.0
      %971 = vmatpush1.msra.mxu0 0.0
      %972 = vmatprep.subr.mxu0 0.0
      %973 = vmatpush1.msra.mxu0 0.0
      %974 = vmatprep.subr.mxu0 0.0
      %975 = vmatpush1.msra.mxu0 0.0
      %976 = vmatprep.subr.mxu0 0.0
      %977 = vmatpush1.msra.mxu0 0.0
      %978 = vmatprep.subr.mxu0 0.0
      %979 = vmatpush1.msra.mxu0 0.0
      %980 = vmatprep.subr.mxu0 %v948
      %981 = vmatpush1.msra.mxu0 %v946
      %982 = vmatprep.subr.mxu0 0.0
      %983 = vmatpush2.msra.mxu0 0.0
      %984 = vmatprep.subr.mxu0 0.0
      %985 = vmatpush2.msra.mxu0 0.0
      %986 = vmatprep.subr.mxu0 0.0
      %987 = vmatpush2.msra.mxu0 0.0
      %988 = vmatprep.subr.mxu0 0.0
      %989 = vmatpush2.msra.mxu0 0.0
      %990 = vmatprep.subr.mxu0 0.0
      %991 = vmatpush2.msra.mxu0 0.0
      %992 = vmatprep.subr.mxu0 0.0
      %993 = vmatpush2.msra.mxu0 0.0
      %994 = vmatprep.subr.mxu0 0.0
      %995 = vmatpush2.msra.mxu0 0.0
      %996 = vmatprep.subr.mxu0 0.0
      %997 = vmatpush2.msra.mxu0 0.0
      %998 = vmatprep.subr.mxu0 0.0
      %999 = vmatpush2.msra.mxu0 0.0
      %1000 = vmatprep.subr.mxu0 0.0
      %1001 = vmatpush2.msra.mxu0 0.0
      %1002 = vmatprep.subr.mxu0 0.0
      %1003 = vmatpush2.msra.mxu0 0.0
      %1004 = vmatprep.subr.mxu0 0.0
      %1005 = vmatpush2.msra.mxu0 0.0
      %1006 = vmatprep.subr.mxu0 0.0
      %1007 = vmatpush2.msra.mxu0 0.0
      %1008 = vmatprep.subr.mxu0 0.0
      %1009 = vmatpush2.msra.mxu0 0.0
      %1010 = vmatprep.subr.mxu0 0.0
      %1011 = vmatpush2.msra.mxu0 0.0
      %1012 = vmatprep.subr.mxu0 0.0
      %1013 = vmatpush2.msra.mxu0 0.0
      %1014 = vmatprep.mubr.f32.mxu0 0.0
      %1015 = vmatmul.mubr.f32.gmra.mxu0 %v944
      %v1016 = vpop.f32.mrf.mxu0
      %v1017 = vadd.f32 0.0, %v1016
      %v1018 = vpop.f32.mrf.mxu0
      %v1019 = vadd.f32 0.0, %v1018
      %1020 = vdwg.mxu0
      %v1021 = vadd.f32 %v907, %v1017
      %v1022 = vadd.f32 %v908, %v1019
      %v1023 = vlaneseq
      %v1024 = vshrl.u32 %v1023, 7
      %v1025 = vsub.s32 6, %v1024
      %v1026 = vrot.slane %v375, %v1025
      %v1027 = vlaneseq
      %v1028 = vshrl.u32 %v1027, 7
      %v1029 = vsub.s32 6, %v1028
      %v1030 = vrot.slane %v376, %v1029
      %v1033 = vcombine.low %v1026, %v1030
      %1034 = vrot.lane.b32.xlu0 %v1033, 32
      %v1035 = vpop.permute.xlu0 %1034
      %v1036 = vrot.slane %v1035, 4
      %vm1037 = vcmask 261120
      %v1038 = vsel %vm1037, %v1036, %v1035
      %v1041 = vmul.f32 %v373, %v1038
      %v1042 = vmul.f32 %v374, %v1036
      %s1043 = scalar_lea.vmem %s4, 48
      %v1044 = vld [vmem:[%s1043] sm:$0xff]
      %v1047 = vcombine.high %v1041, %v1041
      %1048 = vrot.lane.b32.xlu0 %v1041, 96
      %v1049 = vpop.permute.xlu0 %1048
      %1050 = vrot.lane.b32.xlu0 %v1047, 96
      %v1051 = vpop.permute.xlu0 %1050
      %1052 = vrot.lane.b32.xlu0 %v1042, 96
      %v1053 = vpop.permute.xlu0 %1052
      %vm1054 = vcmask 785408
      %v1055 = vsel %vm1054, %v1049, %v1051
      %v1056 = vsel %vm1054, %v1051, %v1053
      %v1058 = vsel %vm427, %v1044, 0
      %v1060 = vsel %vm431, %v1055, 0
      %v1062 = vsel %vm431, %v1056, 0
      %1064 = vmatprep.subr.mxu0 0.0
      %1065 = vmatpush1.msra.mxu0 0.0
      %1066 = vmatprep.subr.mxu0 0.0
      %1067 = vmatpush1.msra.mxu0 0.0
      %1068 = vmatprep.subr.mxu0 0.0
      %1069 = vmatpush1.msra.mxu0 0.0
      %1070 = vmatprep.subr.mxu0 0.0
      %1071 = vmatpush1.msra.mxu0 0.0
      %1072 = vmatprep.subr.mxu0 0.0
      %1073 = vmatpush1.msra.mxu0 0.0
      %1074 = vmatprep.subr.mxu0 0.0
      %1075 = vmatpush1.msra.mxu0 0.0
      %1076 = vmatprep.subr.mxu0 0.0
      %1077 = vmatpush1.msra.mxu0 0.0
      %1078 = vmatprep.subr.mxu0 0.0
      %1079 = vmatpush1.msra.mxu0 0.0
      %1080 = vmatprep.subr.mxu0 0.0
      %1081 = vmatpush1.msra.mxu0 0.0
      %1082 = vmatprep.subr.mxu0 0.0
      %1083 = vmatpush1.msra.mxu0 0.0
      %1084 = vmatprep.subr.mxu0 0.0
      %1085 = vmatpush1.msra.mxu0 0.0
      %1086 = vmatprep.subr.mxu0 0.0
      %1087 = vmatpush1.msra.mxu0 0.0
      %1088 = vmatprep.subr.mxu0 0.0
      %1089 = vmatpush1.msra.mxu0 0.0
      %1090 = vmatprep.subr.mxu0 0.0
      %1091 = vmatpush1.msra.mxu0 0.0
      %1092 = vmatprep.subr.mxu0 0.0
      %1093 = vmatpush1.msra.mxu0 0.0
      %1094 = vmatprep.subr.mxu0 %v1062
      %1095 = vmatpush1.msra.mxu0 %v1060
      %1096 = vmatprep.subr.mxu0 0.0
      %1097 = vmatpush2.msra.mxu0 0.0
      %1098 = vmatprep.subr.mxu0 0.0
      %1099 = vmatpush2.msra.mxu0 0.0
      %1100 = vmatprep.subr.mxu0 0.0
      %1101 = vmatpush2.msra.mxu0 0.0
      %1102 = vmatprep.subr.mxu0 0.0
      %1103 = vmatpush2.msra.mxu0 0.0
      %1104 = vmatprep.subr.mxu0 0.0
      %1105 = vmatpush2.msra.mxu0 0.0
      %1106 = vmatprep.subr.mxu0 0.0
      %1107 = vmatpush2.msra.mxu0 0.0
      %1108 = vmatprep.subr.mxu0 0.0
      %1109 = vmatpush2.msra.mxu0 0.0
      %1110 = vmatprep.subr.mxu0 0.0
      %1111 = vmatpush2.msra.mxu0 0.0
      %1112 = vmatprep.subr.mxu0 0.0
      %1113 = vmatpush2.msra.mxu0 0.0
      %1114 = vmatprep.subr.mxu0 0.0
      %1115 = vmatpush2.msra.mxu0 0.0
      %1116 = vmatprep.subr.mxu0 0.0
      %1117 = vmatpush2.msra.mxu0 0.0
      %1118 = vmatprep.subr.mxu0 0.0
      %1119 = vmatpush2.msra.mxu0 0.0
      %1120 = vmatprep.subr.mxu0 0.0
      %1121 = vmatpush2.msra.mxu0 0.0
      %1122 = vmatprep.subr.mxu0 0.0
      %1123 = vmatpush2.msra.mxu0 0.0
      %1124 = vmatprep.subr.mxu0 0.0
      %1125 = vmatpush2.msra.mxu0 0.0
      %1126 = vmatprep.subr.mxu0 0.0
      %1127 = vmatpush2.msra.mxu0 0.0
      %1128 = vmatprep.mubr.f32.mxu0 0.0
      %1129 = vmatmul.mubr.f32.gmra.mxu0 %v1058
      %v1130 = vpop.f32.mrf.mxu0
      %v1131 = vadd.f32 0.0, %v1130
      %v1132 = vpop.f32.mrf.mxu0
      %v1133 = vadd.f32 0.0, %v1132
      %1134 = vdwg.mxu0
      %v1135 = vadd.f32 %v1021, %v1131
      %v1136 = vadd.f32 %v1022, %v1133
      %v1137 = vlaneseq
      %v1138 = vshrl.u32 %v1137, 7
      %v1139 = vsub.s32 7, %v1138
      %v1140 = vrot.slane %v375, %v1139
      %v1141 = vlaneseq
      %v1142 = vshrl.u32 %v1141, 7
      %v1143 = vsub.s32 7, %v1142
      %v1144 = vrot.slane %v376, %v1143
      %v1147 = vcombine.low %v1140, %v1144
      %1148 = vrot.lane.b32.xlu0 %v1147, 33
      %v1149 = vpop.permute.xlu0 %1148
      %v1150 = vrot.slane %v1149, 4
      %vm1151 = vcmask 269312
      %v1152 = vsel %vm1151, %v1150, %v1149
      %v1155 = vmul.f32 %v373, %v1152
      %v1156 = vmul.f32 %v374, %v1150
      %s1157 = scalar_lea.vmem %s4, 56
      %v1158 = vld [vmem:[%s1157] sm:$0xff]
      %v1161 = vcombine.high %v1155, %v1155
      %1162 = vrot.lane.b32.xlu0 %v1155, 95
      %v1163 = vpop.permute.xlu0 %1162
      %1164 = vrot.lane.b32.xlu0 %v1161, 95
      %v1165 = vpop.permute.xlu0 %1164
      %1166 = vrot.lane.b32.xlu0 %v1156, 95
      %v1167 = vpop.permute.xlu0 %1166
      %vm1168 = vcmask 777216
      %v1169 = vsel %vm1168, %v1163, %v1165
      %v1170 = vsel %vm1168, %v1165, %v1167
      %v1172 = vsel %vm427, %v1158, 0
      %v1174 = vsel %vm431, %v1169, 0
      %v1176 = vsel %vm431, %v1170, 0
      %1178 = vmatprep.subr.mxu0 0.0
      %1179 = vmatpush1.msra.mxu0 0.0
      %1180 = vmatprep.subr.mxu0 0.0
      %1181 = vmatpush1.msra.mxu0 0.0
      %1182 = vmatprep.subr.mxu0 0.0
      %1183 = vmatpush1.msra.mxu0 0.0
      %1184 = vmatprep.subr.mxu0 0.0
      %1185 = vmatpush1.msra.mxu0 0.0
      %1186 = vmatprep.subr.mxu0 0.0
      %1187 = vmatpush1.msra.mxu0 0.0
      %1188 = vmatprep.subr.mxu0 0.0
      %1189 = vmatpush1.msra.mxu0 0.0
      %1190 = vmatprep.subr.mxu0 0.0
      %1191 = vmatpush1.msra.mxu0 0.0
      %1192 = vmatprep.subr.mxu0 0.0
      %1193 = vmatpush1.msra.mxu0 0.0
      %1194 = vmatprep.subr.mxu0 0.0
      %1195 = vmatpush1.msra.mxu0 0.0
      %1196 = vmatprep.subr.mxu0 0.0
      %1197 = vmatpush1.msra.mxu0 0.0
      %1198 = vmatprep.subr.mxu0 0.0
      %1199 = vmatpush1.msra.mxu0 0.0
      %1200 = vmatprep.subr.mxu0 0.0
      %1201 = vmatpush1.msra.mxu0 0.0
      %1202 = vmatprep.subr.mxu0 0.0
      %1203 = vmatpush1.msra.mxu0 0.0
      %1204 = vmatprep.subr.mxu0 0.0
      %1205 = vmatpush1.msra.mxu0 0.0
      %1206 = vmatprep.subr.mxu0 0.0
      %1207 = vmatpush1.msra.mxu0 0.0
      %1208 = vmatprep.subr.mxu0 %v1176
      %1209 = vmatpush1.msra.mxu0 %v1174
      %1210 = vmatprep.subr.mxu0 0.0
      %1211 = vmatpush2.msra.mxu0 0.0
      %1212 = vmatprep.subr.mxu0 0.0
      %1213 = vmatpush2.msra.mxu0 0.0
      %1214 = vmatprep.subr.mxu0 0.0
      %1215 = vmatpush2.msra.mxu0 0.0
      %1216 = vmatprep.subr.mxu0 0.0
      %1217 = vmatpush2.msra.mxu0 0.0
      %1218 = vmatprep.subr.mxu0 0.0
      %1219 = vmatpush2.msra.mxu0 0.0
      %1220 = vmatprep.subr.mxu0 0.0
      %1221 = vmatpush2.msra.mxu0 0.0
      %1222 = vmatprep.subr.mxu0 0.0
      %1223 = vmatpush2.msra.mxu0 0.0
      %1224 = vmatprep.subr.mxu0 0.0
      %1225 = vmatpush2.msra.mxu0 0.0
      %1226 = vmatprep.subr.mxu0 0.0
      %1227 = vmatpush2.msra.mxu0 0.0
      %1228 = vmatprep.subr.mxu0 0.0
      %1229 = vmatpush2.msra.mxu0 0.0
      %1230 = vmatprep.subr.mxu0 0.0
      %1231 = vmatpush2.msra.mxu0 0.0
      %1232 = vmatprep.subr.mxu0 0.0
      %1233 = vmatpush2.msra.mxu0 0.0
      %1234 = vmatprep.subr.mxu0 0.0
      %1235 = vmatpush2.msra.mxu0 0.0
      %1236 = vmatprep.subr.mxu0 0.0
      %1237 = vmatpush2.msra.mxu0 0.0
      %1238 = vmatprep.subr.mxu0 0.0
      %1239 = vmatpush2.msra.mxu0 0.0
      %1240 = vmatprep.subr.mxu0 0.0
      %1241 = vmatpush2.msra.mxu0 0.0
      %1242 = vmatprep.mubr.f32.mxu0 0.0
      %1243 = vmatmul.mubr.f32.gmra.mxu0 %v1172
      %v1244 = vpop.f32.mrf.mxu0
      %v1245 = vadd.f32 0.0, %v1244
      %v1246 = vpop.f32.mrf.mxu0
      %v1247 = vadd.f32 0.0, %v1246
      %1248 = vdwg.mxu0
      %v1249 = vadd.f32 %v1135, %v1245
      %v1250 = vadd.f32 %v1136, %v1247
      %v1251 = vlaneseq
      %v1252 = vshrl.u32 %v1251, 7
      %v1253 = vsub.s32 0, %v1252
      %v1254 = vrot.slane %v377, %v1253
      %v1255 = vlaneseq
      %v1256 = vshrl.u32 %v1255, 7
      %v1257 = vsub.s32 0, %v1256
      %v1258 = vrot.slane %v378, %v1257
      %v1261 = vcombine.low %v1254, %v1258
      %1262 = vrot.lane.b32.xlu0 %v1261, 34
      %v1263 = vpop.permute.xlu0 %1262
      %v1264 = vrot.slane %v1263, 4
      %vm1265 = vcmask 277504
      %v1266 = vsel %vm1265, %v1264, %v1263
      %v1269 = vmul.f32 %v373, %v1266
      %v1270 = vmul.f32 %v374, %v1264
      %s1271 = scalar_lea.vmem %s4, 64
      %v1272 = vld [vmem:[%s1271] sm:$0xff]
      %v1275 = vcombine.high %v1269, %v1269
      %1276 = vrot.lane.b32.xlu0 %v1269, 94
      %v1277 = vpop.permute.xlu0 %1276
      %1278 = vrot.lane.b32.xlu0 %v1275, 94
      %v1279 = vpop.permute.xlu0 %1278
      %1280 = vrot.lane.b32.xlu0 %v1270, 94
      %v1281 = vpop.permute.xlu0 %1280
      %vm1282 = vcmask 769024
      %v1283 = vsel %vm1282, %v1277, %v1279
      %v1284 = vsel %vm1282, %v1279, %v1281
      %v1286 = vsel %vm427, %v1272, 0
      %v1288 = vsel %vm431, %v1283, 0
      %v1290 = vsel %vm431, %v1284, 0
      %1292 = vmatprep.subr.mxu0 0.0
      %1293 = vmatpush1.msra.mxu0 0.0
      %1294 = vmatprep.subr.mxu0 0.0
      %1295 = vmatpush1.msra.mxu0 0.0
      %1296 = vmatprep.subr.mxu0 0.0
      %1297 = vmatpush1.msra.mxu0 0.0
      %1298 = vmatprep.subr.mxu0 0.0
      %1299 = vmatpush1.msra.mxu0 0.0
      %1300 = vmatprep.subr.mxu0 0.0
      %1301 = vmatpush1.msra.mxu0 0.0
      %1302 = vmatprep.subr.mxu0 0.0
      %1303 = vmatpush1.msra.mxu0 0.0
      %1304 = vmatprep.subr.mxu0 0.0
      %1305 = vmatpush1.msra.mxu0 0.0
      %1306 = vmatprep.subr.mxu0 0.0
      %1307 = vmatpush1.msra.mxu0 0.0
      %1308 = vmatprep.subr.mxu0 0.0
      %1309 = vmatpush1.msra.mxu0 0.0
      %1310 = vmatprep.subr.mxu0 0.0
      %1311 = vmatpush1.msra.mxu0 0.0
      %1312 = vmatprep.subr.mxu0 0.0
      %1313 = vmatpush1.msra.mxu0 0.0
      %1314 = vmatprep.subr.mxu0 0.0
      %1315 = vmatpush1.msra.mxu0 0.0
      %1316 = vmatprep.subr.mxu0 0.0
      %1317 = vmatpush1.msra.mxu0 0.0
      %1318 = vmatprep.subr.mxu0 0.0
      %1319 = vmatpush1.msra.mxu0 0.0
      %1320 = vmatprep.subr.mxu0 0.0
      %1321 = vmatpush1.msra.mxu0 0.0
      %1322 = vmatprep.subr.mxu0 %v1290
      %1323 = vmatpush1.msra.mxu0 %v1288
      %1324 = vmatprep.subr.mxu0 0.0
      %1325 = vmatpush2.msra.mxu0 0.0
      %1326 = vmatprep.subr.mxu0 0.0
      %1327 = vmatpush2.msra.mxu0 0.0
      %1328 = vmatprep.subr.mxu0 0.0
      %1329 = vmatpush2.msra.mxu0 0.0
      %1330 = vmatprep.subr.mxu0 0.0
      %1331 = vmatpush2.msra.mxu0 0.0
      %1332 = vmatprep.subr.mxu0 0.0
      %1333 = vmatpush2.msra.mxu0 0.0
      %1334 = vmatprep.subr.mxu0 0.0
      %1335 = vmatpush2.msra.mxu0 0.0
      %1336 = vmatprep.subr.mxu0 0.0
      %1337 = vmatpush2.msra.mxu0 0.0
      %1338 = vmatprep.subr.mxu0 0.0
      %1339 = vmatpush2.msra.mxu0 0.0
      %1340 = vmatprep.subr.mxu0 0.0
      %1341 = vmatpush2.msra.mxu0 0.0
      %1342 = vmatprep.subr.mxu0 0.0
      %1343 = vmatpush2.msra.mxu0 0.0
      %1344 = vmatprep.subr.mxu0 0.0
      %1345 = vmatpush2.msra.mxu0 0.0
      %1346 = vmatprep.subr.mxu0 0.0
      %1347 = vmatpush2.msra.mxu0 0.0
      %1348 = vmatprep.subr.mxu0 0.0
      %1349 = vmatpush2.msra.mxu0 0.0
      %1350 = vmatprep.subr.mxu0 0.0
      %1351 = vmatpush2.msra.mxu0 0.0
      %1352 = vmatprep.subr.mxu0 0.0
      %1353 = vmatpush2.msra.mxu0 0.0
      %1354 = vmatprep.subr.mxu0 0.0
      %1355 = vmatpush2.msra.mxu0 0.0
      %1356 = vmatprep.mubr.f32.mxu0 0.0
      %1357 = vmatmul.mubr.f32.gmra.mxu0 %v1286
      %v1358 = vpop.f32.mrf.mxu0
      %v1359 = vadd.f32 0.0, %v1358
      %v1360 = vpop.f32.mrf.mxu0
      %v1361 = vadd.f32 0.0, %v1360
      %1362 = vdwg.mxu0
      %v1363 = vadd.f32 %v1249, %v1359
      %v1364 = vadd.f32 %v1250, %v1361
      %v1365 = vld [vmem:[%s343] sm:$0xff]
      %1367 = vset.pattern.permute.xlu0 0
      %1368 = vperm.xlu0 %1367, %v1365
      %v1369 = vpop.permute.xlu0 %1368
      %v1371 = vmul.f32 %v1363, %v1369
      %v1372 = vmul.f32 %v1364, %v1369
      %s1373 = sld [smem:[#allocation2]]
      %v1374 = vld [vmem:[%s352] sm:$0x3]
      %v1375 = vstv %s1373
      %v1376 = vmul.f32 %v1375, %v1374
      %v1378 = vlaneseq
      %v1379 = vshrl.u32 %v1378, 7
      %v1380 = vsub.s32 0, %v1379
      %v1381 = vrot.slane %v1376, %v1380
      %v1382 = vlaneseq
      %v1383 = vshrl.u32 %v1382, 7
      %v1384 = vsub.s32 1, %v1383
      %v1385 = vrot.slane %v1376, %v1384
      %v1388 = vadd.f32 %v1371, %v1381
      %v1389 = vadd.f32 %v1372, %v1385
      %v1390 = vld [vmem:[%s5] sm:$0xff]
      %1392 = vset.pattern.permute.xlu0 0
      %1393 = vperm.xlu0 %1392, %v1390
      %v1394 = vpop.permute.xlu0 %1393
      %v1396 = vadd.f32 %v1388, %v1394
      %v1397 = vadd.f32 %v1389, %v1394
      %vm1398 = vcmp.ge.f32.partialorder %v1396, 0.0
      %vm1399 = vcmp.ge.f32.partialorder %v1397, 0.0
      %v1400 = vmul.f32 %v1396, 0.2
      %v1401 = vmul.f32 %v1397, 0.2
      %v1402 = vsel %vm1398, %v1396, %v1400
      %v1403 = vsel %vm1399, %v1397, %v1401
      %1404 = vst [vmem:[%s357] sm:$0xff] %v1402
      %1405 = vst [vmem:[%s357 + $0x8] sm:$0xff] %v1403
      %p1406 = scmp.lt.s32.totalorder %s20, 1
      %s1407 = scalar_select %p1406, %s20, 1
      %s1408 = smul.addr %s1407, 2
      %s1409 = smul.addr %s1408, 8
      %s1410 = scalar_lea.vmem %s8, %s1409
      // Predicated region
      $region53: #{style_block_forward.1} parent=51 // pred_check
        %p1411 = pneg %p226
      $region54: #{style_block_forward.1} parent=51 // pred_check_branch
        %1413 = sbr.rel (%p1411) target = $region56
      $region55: #{style_block_forward.1} parent=51 // pred_region
        _
      $region56: #{style_block_forward.1} parent=51 // pred_fallthru
        _
    $region52: #{style_block_forward.1} parent=5 // pred_fallthru
      _
    %p1414 = scmp.le.s32.totalorder 2, %s15
    // Predicated region
    $region57: #{style_block_forward.1} parent=5 // pred_check
      %p1415 = pneg %p1414
    $region58: #{style_block_forward.1} parent=5 // pred_check_branch
      %1417 = sbr.rel (%p1415) target = $region60
    $region59: #{style_block_forward.1} parent=5 // pred_region
      %s1418 = ssub.s32 %s15, 2
      // Predicated region
      $region61: #{style_block_forward.1} parent=59 // pred_check
        %p1419 = pneg %p232
      $region62: #{style_block_forward.1} parent=59 // pred_check_branch
        %1421 = sbr.rel (%p1419) target = $region64
      $region63: #{style_block_forward.1} parent=59 // pred_region
        %p1422 = scmp.lt.s32.totalorder %s21, 1
        %s1423 = scalar_select %p1422, %s21, 1
        %s1424 = smul.addr %s1423, 2
        %s1425 = smul.addr %s1424, 8
        %s1426 = scalar_lea.vmem %s8, %s1425
      $region64: #{style_block_forward.1} parent=59 // pred_fallthru
        _
    $region60: #{style_block_forward.1} parent=5 // pred_fallthru
      _
  $region6: #{style_block_forward.1} parent=0 // loop_footer
    %s19 = sadd.s32 1, %s15
  $region7: #{style_block_forward.1} parent=0 // loop_footer_branch
    %14 = sbr.rel target = $region3
  $region8: #{style_block_forward.1} parent=0 // loop_exit
    _

</llo_original>
